<compile_context>
chip_gen: v7x
topology: tpu7x:2x2x1
jax: 0.10.0
libtpu: 0.0.40
codegen_flags: <defaults>
</compile_context>

<pallas_src>
import jax
import jax.numpy as jnp
from jax.experimental import pallas as pl
from jax.experimental.pallas import tpu as pltpu


def _dim_reduction_kernel(x_ref, w1_ref, w2_ref, w3_ref, out_ref):
    # Layer 1: (TILE_N, C) @ (C, 256) -> ReLU.  Feed native dtype to the MXU,
    # accumulate in f32 (no explicit astype of x).
    h = jnp.dot(x_ref[...], w1_ref[...], preferred_element_type=jnp.float32)
    h = jnp.maximum(h, 0.0)

    # Layer 2: (TILE_N, 256) @ (256, 128) -> ReLU.
    h = jnp.dot(h.astype(w2_ref.dtype), w2_ref[...],
                preferred_element_type=jnp.float32)
    h = jnp.maximum(h, 0.0)

    # Layer 3: (TILE_N, 128) @ (128, M_pad) -> ReLU.  M_pad is a multiple of
    # 128 so the store below is a lane-dense, unmasked vst.
    h = jnp.dot(h.astype(w3_ref.dtype), w3_ref[...],
                preferred_element_type=jnp.float32)
    h = jnp.maximum(h, 0.0)

    out_ref[...] = h.astype(out_ref.dtype)


def _round_up(v, m):
    return (v + m - 1) // m * m


def dim_reduction_forward(x, w1, w2, w3, *, tile_n=128):
    """x: (N, C); w1: (C, 256); w2: (256, 128); w3: (128, M)  ->  (N, M).

    Weights are stored pre-transposed ((in, out)) so the kernel does
    right-multiplies, equivalent to PyTorch's x @ W.T with W of shape (out, in).
    """
    N, C = x.shape
    H1 = w1.shape[1]
    H2 = w2.shape[1]
    M = w3.shape[1]

    n_pad = _round_up(max(N, 1), tile_n)
    m_pad = _round_up(M, 128)

    # Zero-pad: extra rows are discarded afterwards; extra output columns come
    # from zero weight columns (ReLU(0) = 0) and are sliced off.
    if n_pad != N:
        x = jnp.pad(x, ((0, n_pad - N), (0, 0)))
    if m_pad != M:
        w3 = jnp.pad(w3, ((0, 0), (0, m_pad - M)))

    out_dtype = x.dtype
    flops = 2 * n_pad * (C * H1 + H1 * H2 + H2 * m_pad)
    bytes_accessed = (
        x.size * x.dtype.itemsize
        + w1.size * w1.dtype.itemsize
        + w2.size * w2.dtype.itemsize
        + w3.size * w3.dtype.itemsize
        + n_pad * m_pad * jnp.dtype(out_dtype).itemsize
    )

    out = pl.pallas_call(
        _dim_reduction_kernel,
        out_shape=jax.ShapeDtypeStruct((n_pad, m_pad), out_dtype),
        grid_spec=pltpu.PrefetchScalarGridSpec(
            num_scalar_prefetch=0,
            grid=(n_pad // tile_n,),
            in_specs=[
                # x: tiled over N -> pipelined (double-buffered) DMA.
                pl.BlockSpec((tile_n, C), lambda i: (i, 0)),
                # Weights: resident blocks, fetched once.
                pl.BlockSpec((C, H1), lambda i: (0, 0)),
                pl.BlockSpec((H1, H2), lambda i: (0, 0)),
                pl.BlockSpec((H2, m_pad), lambda i: (0, 0)),
            ],
            out_specs=pl.BlockSpec((tile_n, m_pad), lambda i: (i, 0)),
        ),
        compiler_params=pltpu.CompilerParams(
            # Rows are independent -> shard grid across TCs on v7x megacore.
            dimension_semantics=("parallel",),
            # Explicit VMEM budget; safe on v5e/v6e (128 MiB) and v7x (64 MiB).
            vmem_limit_bytes=32 * 1024 * 1024,
        ),
        cost_estimate=pl.CostEstimate(
            flops=flops, transcendentals=0, bytes_accessed=bytes_accessed),
    )(x, w1, w2, w3)

    return out[:N, :M]


def _reference(x, w1, w2, w3):
    h = jnp.maximum(x @ w1, 0.0)
    h = jnp.maximum(h @ w2, 0.0)
    h = jnp.maximum(h @ w3, 0.0)
    return h


if __name__ == "__main__":
    # Small shapes consistent with DimReduction(n_channels, m_dim=529):
    # hidden dims 256 / 128 are fixed by the module.
    N, C, H1, H2, M = 256, 512, 256, 128, 529

    key = jax.random.PRNGKey(0)
    kx, k1, k2, k3 = jax.random.split(key, 4)

    x = jax.random.normal(kx, (N, C), dtype=jnp.float32)

    # PyTorch Linear(bias=False)-style uniform init, weights stored (in, out).
    b1 = 1.0 / jnp.sqrt(jnp.float32(C))
    b2 = 1.0 / jnp.sqrt(jnp.float32(H1))
    b3 = 1.0 / jnp.sqrt(jnp.float32(H2))
    w1 = jax.random.uniform(k1, (C, H1), jnp.float32, -b1, b1)
    w2 = jax.random.uniform(k2, (H1, H2), jnp.float32, -b2, b2)
    w3 = jax.random.uniform(k3, (H2, M), jnp.float32, -b3, b3)

    out = dim_reduction_forward(x, w1, w2, w3)
    out = jax.block_until_ready(out)

    ref = _reference(x, w1, w2, w3)
    assert out.shape == (N, M), out.shape
    assert jnp.allclose(out, ref, atol=1e-4, rtol=1e-4), "mismatch vs JAX reference"

    print("KERNEL_OK")
</pallas_src>

<mosaic_0001>
module attributes {stable_mosaic.version = 11 : i64} {
  func.func @_dim_reduction_kernel(%arg0: i32, %arg1: memref<128x512xf32, #tpu.memory_space<vmem>>, %arg2: memref<512x256xf32, #tpu.memory_space<vmem>>, %arg3: memref<256x128xf32, #tpu.memory_space<vmem>>, %arg4: memref<128x640xf32, #tpu.memory_space<vmem>>, %arg5: memref<128x640xf32, #tpu.memory_space<vmem>>) attributes {dimension_semantics = [#tpu.dimension_semantics<parallel>], iteration_bounds = array<i64: 2>, scalar_prefetch = 0 : i64, scratch_operands = 0 : i64, tpu.core_type = #tpu.core_type<tc>, window_params = [{transform_indices = @transform_0, window_bounds = array<i64: 128, 512>}, {pipeline_mode = #tpu.pipeline_mode<synchronous>, transform_indices = @transform_1, window_bounds = array<i64: 512, 256>}, {pipeline_mode = #tpu.pipeline_mode<synchronous>, transform_indices = @transform_2, window_bounds = array<i64: 256, 128>}, {pipeline_mode = #tpu.pipeline_mode<synchronous>, transform_indices = @transform_3, window_bounds = array<i64: 128, 640>}, {transform_indices = @transform_4, window_bounds = array<i64: 128, 640>}]} {
    %c0 = arith.constant 0 : index
    %c0_0 = arith.constant 0 : index
    %0 = vector.load %arg1[%c0, %c0_0] : memref<128x512xf32, #tpu.memory_space<vmem>>, vector<128x512xf32>
    %c0_1 = arith.constant 0 : index
    %c0_2 = arith.constant 0 : index
    %1 = vector.load %arg2[%c0_1, %c0_2] : memref<512x256xf32, #tpu.memory_space<vmem>>, vector<512x256xf32>
    %cst = arith.constant dense<0.000000e+00> : vector<128x256xf32>
    %2 = tpu.matmul %0, %1, %cst {dimension_numbers = #tpu.dot_dimension_numbers<[1], [0], [0], [1], [0, 0, 1, 1], [], []>} : vector<128x512xf32>, vector<512x256xf32>, vector<128x256xf32> -> vector<128x256xf32>
    %cst_3 = arith.constant 0.000000e+00 : f32
    %3 = vector.broadcast %cst_3 : f32 to vector<128x256xf32>
    %4 = arith.maximumf %2, %3 : vector<128x256xf32>
    %c0_4 = arith.constant 0 : index
    %c0_5 = arith.constant 0 : index
    %5 = vector.load %arg3[%c0_4, %c0_5] : memref<256x128xf32, #tpu.memory_space<vmem>>, vector<256x128xf32>
    %cst_6 = arith.constant dense<0.000000e+00> : vector<128x128xf32>
    %6 = tpu.matmul %4, %5, %cst_6 {dimension_numbers = #tpu.dot_dimension_numbers<[1], [0], [0], [1], [0, 0, 1, 1], [], []>} : vector<128x256xf32>, vector<256x128xf32>, vector<128x128xf32> -> vector<128x128xf32>
    %cst_7 = arith.constant 0.000000e+00 : f32
    %7 = vector.broadcast %cst_7 : f32 to vector<128x128xf32>
    %8 = arith.maximumf %6, %7 : vector<128x128xf32>
    %c0_8 = arith.constant 0 : index
    %c0_9 = arith.constant 0 : index
    %9 = vector.load %arg4[%c0_8, %c0_9] : memref<128x640xf32, #tpu.memory_space<vmem>>, vector<128x640xf32>
    %cst_10 = arith.constant dense<0.000000e+00> : vector<128x640xf32>
    %10 = tpu.matmul %8, %9, %cst_10 {dimension_numbers = #tpu.dot_dimension_numbers<[1], [0], [0], [1], [0, 0, 1, 1], [], []>} : vector<128x128xf32>, vector<128x640xf32>, vector<128x640xf32> -> vector<128x640xf32>
    %cst_11 = arith.constant 0.000000e+00 : f32
    %11 = vector.broadcast %cst_11 : f32 to vector<128x640xf32>
    %12 = arith.maximumf %10, %11 : vector<128x640xf32>
    %c0_12 = arith.constant 0 : index
    %c0_13 = arith.constant 0 : index
    %13 = vector.load %arg5[%c0_12, %c0_13] : memref<128x640xf32, #tpu.memory_space<vmem>>, vector<128x640xf32>
    tpu.vector_store %arg5[%c0_12, %c0_13], %12 {strides = array<i32>} : memref<128x640xf32, #tpu.memory_space<vmem>>, vector<128x640xf32>,
    return
  }
  func.func @transform_0(%arg0: i32) -> (i32, i32) {
    %c0_i32 = arith.constant 0 : i32
    %c0_i32_0 = arith.constant 0 : i32
    return %arg0, %c0_i32 : i32, i32
  }
  func.func @transform_1(%arg0: i32) -> (i32, i32) {
    %c0_i32 = arith.constant 0 : i32
    %c0_i32_0 = arith.constant 0 : i32
    %c0_i32_1 = arith.constant 0 : i32
    return %c0_i32, %c0_i32_0 : i32, i32
  }
  func.func @transform_2(%arg0: i32) -> (i32, i32) {
    %c0_i32 = arith.constant 0 : i32
    %c0_i32_0 = arith.constant 0 : i32
    %c0_i32_1 = arith.constant 0 : i32
    return %c0_i32, %c0_i32_0 : i32, i32
  }
  func.func @transform_3(%arg0: i32) -> (i32, i32) {
    %c0_i32 = arith.constant 0 : i32
    %c0_i32_0 = arith.constant 0 : i32
    %c0_i32_1 = arith.constant 0 : i32
    return %c0_i32, %c0_i32_0 : i32, i32
  }
  func.func @transform_4(%arg0: i32) -> (i32, i32) {
    %c0_i32 = arith.constant 0 : i32
    %c0_i32_0 = arith.constant 0 : i32
    return %arg0, %c0_i32 : i32, i32
  }
}

</mosaic_0001>

<llo_original>
// kernel: tpu_custom_call.1
$region0: #{tpu_custom_call.1}
  #allocation0 [shape = 'u32[]', space=smem, size = 0x4, offset = 0x4, fixed_abs, tag = 'smem constant byte address 0x4 - core index']
  #allocation1 [shape = 'u32[144,128]{1,0:T(1,128)}', space=vmem, size = 0x12000, scoped, tag = 'internal scratch']
  %s0 = inlined_call_operand.hbm [shape: f32[256,512], index: 0, kind: input, shape index: {}]
  %s1 = inlined_call_operand.hbm [shape: f32[512,256], index: 1, kind: input, shape index: {}]
  %s2 = inlined_call_operand.hbm [shape: f32[256,128], index: 2, kind: input, shape index: {}]
  %s3 = inlined_call_operand.hbm [shape: f32[128,640], index: 3, kind: input, shape index: {}]
  %s4 = inlined_call_operand.hbm [shape: f32[256,640], index: 4, kind: output, shape index: {}]
  %s5 = sld [smem:[#allocation0]]
  $region65: #{tpu_custom_call.1} parent=0
    _
  %s7 = ssub.s32 1, %s5
  %s8 = scalar_select 0, %s7, %s5
  $region1: #{tpu_custom_call.1} parent=0
    #allocation2 [shape = 'u8[524288]{0}', space=vmem, size = 0x80000, scoped, tag = 'input window, operand 0']
    #allocation3 [shape = 's32[2]{0}', space=sflag, size = 0x8, scoped, tag = 'scoped memory for tpu_custom_call.1']
    #allocation4 [shape = 's32[2]{0}', space=sflag, size = 0x8, scoped, tag = 'scoped memory for tpu_custom_call.1']
    #allocation5 [shape = 'u8[524288]{0}', space=vmem, size = 0x80000, scoped, tag = 'input window, operand 1, single buffered']
    #allocation6 [shape = 's32[1]{0}', space=sflag, size = 0x4, scoped, tag = 'scoped memory for tpu_custom_call.1']
    #allocation7 [shape = 'u8[131072]{0}', space=vmem, size = 0x20000, scoped, tag = 'input window, operand 2, single buffered']
    #allocation8 [shape = 'u8[327680]{0}', space=vmem, size = 0x50000, scoped, tag = 'input window, operand 3, single buffered']
    #allocation9 [shape = 's32[1]{0}', space=sflag, size = 0x4, scoped, tag = 'scoped memory for tpu_custom_call.1']
    #allocation10 [shape = 'u8[655360]{0}', space=vmem, size = 0xa0000, scoped, tag = 'output window, operand 0']
    %9 = vsyncpa [#allocation3], 0
    %s10 = scalar_lea.sflag [#allocation3], 1
    %11 = vsyncpa %s10, 0
    %12 = vsyncpa [#allocation6], 0
    %13 = vsyncpa [#allocation9], 0
    %14 = vsyncpa [#allocation4], 0
    %s15 = scalar_lea.sflag [#allocation4], 1
    %16 = vsyncpa %s15, 0
    loop: start=0, step=1, limit=4
    $region2: #{tpu_custom_call.1} parent=1 // loop_pre_header
      _
    $region3: #{tpu_custom_call.1} parent=1 // loop_header
      %s18 = sphi 0, %s22
      %p19 = scmp.ge.s32.totalorder %s18, 4
      %s28 = sphi 0, %s30
      %s31 = sphi 0, %s28
      %s32 = sphi 0, %s31
      %s48 = sphi 0, %s32
      %s52 = sphi 0, %s52
      %s54 = sphi 0, %s52
      %s55 = sphi 0, %s54
      %s69 = sphi 0, %s55
      %s73 = sphi 0, %s73
      %s75 = sphi 0, %s73
      %s76 = sphi 0, %s75
      %s90 = sphi 0, %s76
      %s94 = sphi 0, %s94
      %s96 = sphi 0, %s94
      %s97 = sphi 0, %s96
      %s111 = sphi 0, %s97
      %s117 = sphi 0, %s119
      %s120 = sphi 0, %s117
      %s121 = sphi 0, %s120
      %s137 = sphi 0, %s121
    $region4: #{tpu_custom_call.1} parent=1 // loop_header_branch
      %21 = sbr.rel (%p19) target = $region8
    $region5: #{tpu_custom_call.1} parent=1 // loop_body
      %s23 = ssub.s32 %s18, 1
      %s24 = ssub.s32 %s18, 2
      %s25 = sadd.s32 %s18, 1
      %s26 = ssub.s32 %s18, %s25
      %p27 = scmp.eq.s32.totalorder %s26, 0
      %s29 = sadd.s32 %s28, 1
      %s30 = scalar_select %p27, %s28, %s29
      %p33 = pneg %p27
      %p34 = scmp.eq.s32.totalorder %s18, 1
      %p35 = por %p33, %p34
      %p36 = scmp.ne.s32.totalorder %s28, %s31
      %p37 = scmp.eq.s32.totalorder %s18, 0
      %p38 = por %p36, %p37
      %p39 = scmp.ne.s32.totalorder %s28, %s31
      %p40 = scmp.eq.s32.totalorder %s23, 1
      %p41 = por %p39, %p40
      %p42 = scmp.ne.s32.totalorder %s31, %s32
      %p43 = scmp.eq.s32.totalorder %s23, 0
      %p44 = por %p42, %p43
      %p45 = scmp.ne.s32.totalorder %s31, %s32
      %p46 = scmp.eq.s32.totalorder %s24, 1
      %p47 = por %p45, %p46
      %p49 = scmp.ne.s32.totalorder %s32, %s48
      %p50 = scmp.eq.s32.totalorder %s24, 0
      %p51 = por %p49, %p50
      %s53 = sadd.s32 %s52, 1
      %p56 = scmp.eq.s32.totalorder %s18, 1
      %p57 = scmp.ne.s32.totalorder %s52, %s54
      %p58 = scmp.eq.s32.totalorder %s18, 0
      %p59 = por %p57, %p58
      %p60 = scmp.ne.s32.totalorder %s52, %s54
      %p61 = scmp.eq.s32.totalorder %s23, 1
      %p62 = por %p60, %p61
      %p63 = scmp.ne.s32.totalorder %s54, %s55
      %p64 = scmp.eq.s32.totalorder %s23, 0
      %p65 = por %p63, %p64
      %p66 = scmp.ne.s32.totalorder %s54, %s55
      %p67 = scmp.eq.s32.totalorder %s24, 1
      %p68 = por %p66, %p67
      %p70 = scmp.ne.s32.totalorder %s55, %s69
      %p71 = scmp.eq.s32.totalorder %s24, 0
      %p72 = por %p70, %p71
      %s74 = sadd.s32 %s73, 1
      %p77 = scmp.eq.s32.totalorder %s18, 1
      %p78 = scmp.ne.s32.totalorder %s73, %s75
      %p79 = scmp.eq.s32.totalorder %s18, 0
      %p80 = por %p78, %p79
      %p81 = scmp.ne.s32.totalorder %s73, %s75
      %p82 = scmp.eq.s32.totalorder %s23, 1
      %p83 = por %p81, %p82
      %p84 = scmp.ne.s32.totalorder %s75, %s76
      %p85 = scmp.eq.s32.totalorder %s23, 0
      %p86 = por %p84, %p85
      %p87 = scmp.ne.s32.totalorder %s75, %s76
      %p88 = scmp.eq.s32.totalorder %s24, 1
      %p89 = por %p87, %p88
      %p91 = scmp.ne.s32.totalorder %s76, %s90
      %p92 = scmp.eq.s32.totalorder %s24, 0
      %p93 = por %p91, %p92
      %s95 = sadd.s32 %s94, 1
      %p98 = scmp.eq.s32.totalorder %s18, 1
      %p99 = scmp.ne.s32.totalorder %s94, %s96
      %p100 = scmp.eq.s32.totalorder %s18, 0
      %p101 = por %p99, %p100
      %p102 = scmp.ne.s32.totalorder %s94, %s96
      %p103 = scmp.eq.s32.totalorder %s23, 1
      %p104 = por %p102, %p103
      %p105 = scmp.ne.s32.totalorder %s96, %s97
      %p106 = scmp.eq.s32.totalorder %s23, 0
      %p107 = por %p105, %p106
      %p108 = scmp.ne.s32.totalorder %s96, %s97
      %p109 = scmp.eq.s32.totalorder %s24, 1
      %p110 = por %p108, %p109
      %p112 = scmp.ne.s32.totalorder %s97, %s111
      %p113 = scmp.eq.s32.totalorder %s24, 0
      %p114 = por %p112, %p113
      %s115 = ssub.s32 %s18, %s25
      %p116 = scmp.eq.s32.totalorder %s115, 0
      %s118 = sadd.s32 %s117, 1
      %s119 = scalar_select %p116, %s117, %s118
      %p122 = pneg %p116
      %p123 = scmp.eq.s32.totalorder %s18, 1
      %p124 = por %p122, %p123
      %p125 = scmp.ne.s32.totalorder %s117, %s120
      %p126 = scmp.eq.s32.totalorder %s18, 0
      %p127 = por %p125, %p126
      %p128 = scmp.ne.s32.totalorder %s117, %s120
      %p129 = scmp.eq.s32.totalorder %s23, 1
      %p130 = por %p128, %p129
      %p131 = scmp.ne.s32.totalorder %s120, %s121
      %p132 = scmp.eq.s32.totalorder %s23, 0
      %p133 = por %p131, %p132
      %p134 = scmp.ne.s32.totalorder %s120, %s121
      %p135 = scmp.eq.s32.totalorder %s24, 1
      %p136 = por %p134, %p135
      %p138 = scmp.ne.s32.totalorder %s121, %s137
      %p139 = scmp.eq.s32.totalorder %s24, 0
      %p140 = por %p138, %p139
      %p141 = scmp.le.s32.totalorder 1, %s18
      %p142 = scmp.lt.s32.totalorder %s18, 3
      %p143 = pnand %p141, %p142
      %p144 = pneg %p143
      // Predicated region
      $region9: #{tpu_custom_call.1} parent=5 // pred_check
        _
      $region10: #{tpu_custom_call.1} parent=5 // pred_check_branch
        %146 = sbr.rel (%p143) target = $region12
      $region11: #{tpu_custom_call.1} parent=5 // pred_region
        %s147 = ssub.s32 %s18, 1
        // Predicated region
        $region13: #{tpu_custom_call.1} parent=11 // pred_check
          %p148 = pneg %p65
        $region14: #{tpu_custom_call.1} parent=11 // pred_check_branch
          %150 = sbr.rel (%p148) target = $region16
        $region15: #{tpu_custom_call.1} parent=11 // pred_region
          %s152 = ssub.s32 16384, 16384
          %153 = vsyncadd [#allocation6], %s152
          %s154 = sshll.u32 [#allocation5], 4
          %s155 = int_to_ptr.vmem [resolvable:$true] %s154
          %160 = dma.hbm_to_vmem [thread:$0]  %s1, 16384, %s155, [#allocation6], 256, 256, 16
        $region16: #{tpu_custom_call.1} parent=11 // pred_fallthru
          _
        // Predicated region
        $region17: #{tpu_custom_call.1} parent=11 // pred_check
          %p161 = pneg %p86
        $region18: #{tpu_custom_call.1} parent=11 // pred_check_branch
          %163 = sbr.rel (%p161) target = $region20
        $region19: #{tpu_custom_call.1} parent=11 // pred_region
          %s165 = ssub.s32 4096, 4096
          %166 = vsyncadd [#allocation6], %s165
          %s167 = sshll.u32 [#allocation7], 4
          %s168 = int_to_ptr.vmem [resolvable:$true] %s167
          %173 = dma.hbm_to_vmem [thread:$0]  %s2, 4096, %s168, [#allocation6], 128, 128, 8
        $region20: #{tpu_custom_call.1} parent=11 // pred_fallthru
          _
        // Predicated region
        $region21: #{tpu_custom_call.1} parent=11 // pred_check
          %p174 = pneg %p107
        $region22: #{tpu_custom_call.1} parent=11 // pred_check_branch
          %176 = sbr.rel (%p174) target = $region24
        $region23: #{tpu_custom_call.1} parent=11 // pred_region
          %s178 = ssub.s32 10240, 10240
          %179 = vsyncadd [#allocation9], %s178
          %s180 = sshll.u32 [#allocation8], 4
          %s181 = int_to_ptr.vmem [resolvable:$true] %s180
          %186 = dma.hbm_to_vmem [thread:$0]  %s3, 10240, %s181, [#allocation9], 640, 640, 40
        $region24: #{tpu_custom_call.1} parent=11 // pred_fallthru
          _
      $region12: #{tpu_custom_call.1} parent=5 // pred_fallthru
        _
      %p187 = scmp.lt.s32.totalorder %s18, 2
      // Predicated region
      $region25: #{tpu_custom_call.1} parent=5 // pred_check
        %p188 = pneg %p187
      $region26: #{tpu_custom_call.1} parent=5 // pred_check_branch
        %190 = sbr.rel (%p188) target = $region28
      $region27: #{tpu_custom_call.1} parent=5 // pred_region
        // Predicated region
        $region29: #{tpu_custom_call.1} parent=27 // pred_check
          %p191 = pneg %p38
        $region30: #{tpu_custom_call.1} parent=27 // pred_check_branch
          %193 = sbr.rel (%p191) target = $region32
        $region31: #{tpu_custom_call.1} parent=27 // pred_region
          %s194 = sand.u32 %s28, 1
          %s195 = scalar_lea.sflag [#allocation3], %s194
          %s196 = sand.u32 %s28, 1
          %s197 = smul.addr %s196, 512
          %s198 = scalar_lea.vmem [#allocation2], %s197
          %s199 = smul.u32 16, %s18
          %s201 = ssub.s32 8192, 8192
          %202 = vsyncadd %s195, %s201
          %s203 = smul.addr %s199, 4
          %s204 = smul.addr %s203, 128
          %s205 = scalar_lea.hbm %s0, %s204
          %s206 = sshll.u32 %s198, 4
          %s207 = int_to_ptr.vmem [resolvable:$true] %s206
          %212 = dma.hbm_to_vmem [thread:$0]  %s205, 8192, %s207, %s195, 512, 512, 32
        $region32: #{tpu_custom_call.1} parent=27 // pred_fallthru
          _
      $region28: #{tpu_custom_call.1} parent=5 // pred_fallthru
        _
      %p213 = scmp.le.s32.totalorder 1, %s18
      %p214 = scmp.lt.s32.totalorder %s18, 3
      %p215 = pnand %p213, %p214
      %p216 = pneg %p215
      // Predicated region
      $region33: #{tpu_custom_call.1} parent=5 // pred_check
        _
      $region34: #{tpu_custom_call.1} parent=5 // pred_check_branch
        %218 = sbr.rel (%p215) target = $region36
      $region35: #{tpu_custom_call.1} parent=5 // pred_region
        %s219 = ssub.s32 %s18, 1
        %s220 = sand.u32 %s31, 1
        %s221 = scalar_lea.sflag [#allocation3], %s220
        %s222 = sand.u32 %s31, 1
        %s223 = smul.addr %s222, 512
        %s224 = scalar_lea.vmem [#allocation2], %s223
        // Predicated region
        $region37: #{tpu_custom_call.1} parent=35 // pred_check
          %p225 = pneg %p44
        $region38: #{tpu_custom_call.1} parent=35 // pred_check_branch
          %227 = sbr.rel (%p225) target = $region40
        $region39: #{tpu_custom_call.1} parent=35 // pred_region
          %228 = dma.done %s221, 8192
        $region40: #{tpu_custom_call.1} parent=35 // pred_fallthru
          _
        // Predicated region
        $region41: #{tpu_custom_call.1} parent=35 // pred_check
          %p229 = pneg %p65
        $region42: #{tpu_custom_call.1} parent=35 // pred_check_branch
          %231 = sbr.rel (%p229) target = $region44
        $region43: #{tpu_custom_call.1} parent=35 // pred_region
          %232 = dma.done [#allocation6], 16384
        $region44: #{tpu_custom_call.1} parent=35 // pred_fallthru
          _
        // Predicated region
        $region45: #{tpu_custom_call.1} parent=35 // pred_check
          %p233 = pneg %p86
        $region46: #{tpu_custom_call.1} parent=35 // pred_check_branch
          %235 = sbr.rel (%p233) target = $region48
        $region47: #{tpu_custom_call.1} parent=35 // pred_region
          %236 = dma.done [#allocation6], 4096
        $region48: #{tpu_custom_call.1} parent=35 // pred_fallthru
          _
        // Predicated region
        $region49: #{tpu_custom_call.1} parent=35 // pred_check
          %p237 = pneg %p107
        $region50: #{tpu_custom_call.1} parent=35 // pred_check_branch
          %239 = sbr.rel (%p237) target = $region52
        $region51: #{tpu_custom_call.1} parent=35 // pred_region
          %240 = dma.done [#allocation9], 10240
        $region52: #{tpu_custom_call.1} parent=35 // pred_fallthru
          _
        %s241 = sand.u32 %s31, 1
        %s242 = scalar_lea.sflag [#allocation3], %s241
        %s243 = sand.u32 %s31, 1
        %s244 = smul.addr %s243, 512
        %s245 = scalar_lea.vmem [#allocation2], %s244
        %p246 = pneg %p44
        %p247 = pneg %p41
        %p248 = pneg %p65
        %p249 = pneg %p62
        %p250 = pneg %p86
        %p251 = pneg %p83
        %p252 = pneg %p107
        %p253 = pneg %p104
        %p254 = pneg %p133
        %p255 = pneg %p130
        %s256 = sand.u32 %s120, 1
        %s257 = scalar_lea.sflag [#allocation4], %s256
        %s258 = sand.u32 %s120, 1
        %s259 = smul.addr %s258, 640
        %s260 = scalar_lea.vmem [#allocation10], %s259
        %s261 = smul.u32 16, %s23
        %s262 = smul.u32 16, %s23
        %v263 = vld [vmem:[%s224] sm:$0xff]
        %v264 = vld [vmem:[%s224 + $0x8] sm:$0xff]
        %v265 = vld [vmem:[%s224 + $0x10] sm:$0xff]
        %v266 = vld [vmem:[%s224 + $0x18] sm:$0xff]
        %v267 = vld [vmem:[%s224 + $0x20] sm:$0xff]
        %v268 = vld [vmem:[%s224 + $0x28] sm:$0xff]
        %v269 = vld [vmem:[%s224 + $0x30] sm:$0xff]
        %v270 = vld [vmem:[%s224 + $0x38] sm:$0xff]
        %v271 = vld [vmem:[%s224 + $0x40] sm:$0xff]
        %v272 = vld [vmem:[%s224 + $0x48] sm:$0xff]
        %v273 = vld [vmem:[%s224 + $0x50] sm:$0xff]
        %v274 = vld [vmem:[%s224 + $0x58] sm:$0xff]
        %v275 = vld [vmem:[%s224 + $0x60] sm:$0xff]
        %v276 = vld [vmem:[%s224 + $0x68] sm:$0xff]
        %v277 = vld [vmem:[%s224 + $0x70] sm:$0xff]
        %v278 = vld [vmem:[%s224 + $0x78] sm:$0xff]
        %v279 = vld [vmem:[%s224 + $0x80] sm:$0xff]
        %v280 = vld [vmem:[%s224 + $0x88] sm:$0xff]
        %v281 = vld [vmem:[%s224 + $0x90] sm:$0xff]
        %v282 = vld [vmem:[%s224 + $0x98] sm:$0xff]
        %v283 = vld [vmem:[%s224 + $0xa0] sm:$0xff]
        %v284 = vld [vmem:[%s224 + $0xa8] sm:$0xff]
        %v285 = vld [vmem:[%s224 + $0xb0] sm:$0xff]
        %v286 = vld [vmem:[%s224 + $0xb8] sm:$0xff]
        %v287 = vld [vmem:[%s224 + $0xc0] sm:$0xff]
        %v288 = vld [vmem:[%s224 + $0xc8] sm:$0xff]
        %v289 = vld [vmem:[%s224 + $0xd0] sm:$0xff]
        %v290 = vld [vmem:[%s224 + $0xd8] sm:$0xff]
        %v291 = vld [vmem:[%s224 + $0xe0] sm:$0xff]
        %v292 = vld [vmem:[%s224 + $0xe8] sm:$0xff]
        %v293 = vld [vmem:[%s224 + $0xf0] sm:$0xff]
        %v294 = vld [vmem:[%s224 + $0xf8] sm:$0xff]
        %v295 = vld [vmem:[%s224 + $0x100] sm:$0xff]
        %v296 = vld [vmem:[%s224 + $0x108] sm:$0xff]
        %v297 = vld [vmem:[%s224 + $0x110] sm:$0xff]
        %v298 = vld [vmem:[%s224 + $0x118] sm:$0xff]
        %v299 = vld [vmem:[%s224 + $0x120] sm:$0xff]
        %v300 = vld [vmem:[%s224 + $0x128] sm:$0xff]
        %v301 = vld [vmem:[%s224 + $0x130] sm:$0xff]
        %v302 = vld [vmem:[%s224 + $0x138] sm:$0xff]
        %v303 = vld [vmem:[%s224 + $0x140] sm:$0xff]
        %v304 = vld [vmem:[%s224 + $0x148] sm:$0xff]
        %v305 = vld [vmem:[%s224 + $0x150] sm:$0xff]
        %v306 = vld [vmem:[%s224 + $0x158] sm:$0xff]
        %v307 = vld [vmem:[%s224 + $0x160] sm:$0xff]
        %v308 = vld [vmem:[%s224 + $0x168] sm:$0xff]
        %v309 = vld [vmem:[%s224 + $0x170] sm:$0xff]
        %v310 = vld [vmem:[%s224 + $0x178] sm:$0xff]
        %v311 = vld [vmem:[%s224 + $0x180] sm:$0xff]
        %v312 = vld [vmem:[%s224 + $0x188] sm:$0xff]
        %v313 = vld [vmem:[%s224 + $0x190] sm:$0xff]
        %v314 = vld [vmem:[%s224 + $0x198] sm:$0xff]
        %v315 = vld [vmem:[%s224 + $0x1a0] sm:$0xff]
        %v316 = vld [vmem:[%s224 + $0x1a8] sm:$0xff]
        %v317 = vld [vmem:[%s224 + $0x1b0] sm:$0xff]
        %v318 = vld [vmem:[%s224 + $0x1b8] sm:$0xff]
        %v319 = vld [vmem:[%s224 + $0x1c0] sm:$0xff]
        %v320 = vld [vmem:[%s224 + $0x1c8] sm:$0xff]
        %v321 = vld [vmem:[%s224 + $0x1d0] sm:$0xff]
        %v322 = vld [vmem:[%s224 + $0x1d8] sm:$0xff]
        %v323 = vld [vmem:[%s224 + $0x1e0] sm:$0xff]
        %v324 = vld [vmem:[%s224 + $0x1e8] sm:$0xff]
        %v325 = vld [vmem:[%s224 + $0x1f0] sm:$0xff]
        %v326 = vld [vmem:[%s224 + $0x1f8] sm:$0xff]
        %v327 = vld [vmem:[#allocation5] sm:$0xff]
        %v328 = vld [vmem:[#allocation5 + $0x8] sm:$0xff]
        %v329 = vld [vmem:[#allocation5 + $0x10] sm:$0xff]
        %v330 = vld [vmem:[#allocation5 + $0x18] sm:$0xff]
        %v331 = vld [vmem:[#allocation5 + $0x20] sm:$0xff]
        %v332 = vld [vmem:[#allocation5 + $0x28] sm:$0xff]
        %v333 = vld [vmem:[#allocation5 + $0x30] sm:$0xff]
        %v334 = vld [vmem:[#allocation5 + $0x38] sm:$0xff]
        %v335 = vld [vmem:[#allocation5 + $0x40] sm:$0xff]
        %v336 = vld [vmem:[#allocation5 + $0x48] sm:$0xff]
        %v337 = vld [vmem:[#allocation5 + $0x50] sm:$0xff]
        %v338 = vld [vmem:[#allocation5 + $0x58] sm:$0xff]
        %v339 = vld [vmem:[#allocation5 + $0x60] sm:$0xff]
        %v340 = vld [vmem:[#allocation5 + $0x68] sm:$0xff]
        %v341 = vld [vmem:[#allocation5 + $0x70] sm:$0xff]
        %v342 = vld [vmem:[#allocation5 + $0x78] sm:$0xff]
        %v343 = vld [vmem:[#allocation5 + $0x80] sm:$0xff]
        %v344 = vld [vmem:[#allocation5 + $0x88] sm:$0xff]
        %v345 = vld [vmem:[#allocation5 + $0x90] sm:$0xff]
        %v346 = vld [vmem:[#allocation5 + $0x98] sm:$0xff]
        %v347 = vld [vmem:[#allocation5 + $0xa0] sm:$0xff]
        %v348 = vld [vmem:[#allocation5 + $0xa8] sm:$0xff]
        %v349 = vld [vmem:[#allocation5 + $0xb0] sm:$0xff]
        %v350 = vld [vmem:[#allocation5 + $0xb8] sm:$0xff]
        %v351 = vld [vmem:[#allocation5 + $0xc0] sm:$0xff]
        %v352 = vld [vmem:[#allocation5 + $0xc8] sm:$0xff]
        %v353 = vld [vmem:[#allocation5 + $0xd0] sm:$0xff]
        %v354 = vld [vmem:[#allocation5 + $0xd8] sm:$0xff]
        %v355 = vld [vmem:[#allocation5 + $0xe0] sm:$0xff]
        %v356 = vld [vmem:[#allocation5 + $0xe8] sm:$0xff]
        %v357 = vld [vmem:[#allocation5 + $0xf0] sm:$0xff]
        %v358 = vld [vmem:[#allocation5 + $0xf8] sm:$0xff]
        %v359 = vld [vmem:[#allocation5 + $0x100] sm:$0xff]
        %v360 = vld [vmem:[#allocation5 + $0x108] sm:$0xff]
        %v361 = vld [vmem:[#allocation5 + $0x110] sm:$0xff]
        %v362 = vld [vmem:[#allocation5 + $0x118] sm:$0xff]
        %v363 = vld [vmem:[#allocation5 + $0x120] sm:$0xff]
        %v364 = vld [vmem:[#allocation5 + $0x128] sm:$0xff]
        %v365 = vld [vmem:[#allocation5 + $0x130] sm:$0xff]
        %v366 = vld [vmem:[#allocation5 + $0x138] sm:$0xff]
        %v367 = vld [vmem:[#allocation5 + $0x140] sm:$0xff]
        %v368 = vld [vmem:[#allocation5 + $0x148] sm:$0xff]
        %v369 = vld [vmem:[#allocation5 + $0x150] sm:$0xff]
        %v370 = vld [vmem:[#allocation5 + $0x158] sm:$0xff]
        %v371 = vld [vmem:[#allocation5 + $0x160] sm:$0xff]
        %v372 = vld [vmem:[#allocation5 + $0x168] sm:$0xff]
        %v373 = vld [vmem:[#allocation5 + $0x170] sm:$0xff]
        %v374 = vld [vmem:[#allocation5 + $0x178] sm:$0xff]
        %v375 = vld [vmem:[#allocation5 + $0x180] sm:$0xff]
        %v376 = vld [vmem:[#allocation5 + $0x188] sm:$0xff]
        %v377 = vld [vmem:[#allocation5 + $0x190] sm:$0xff]
        %v378 = vld [vmem:[#allocation5 + $0x198] sm:$0xff]
        %v379 = vld [vmem:[#allocation5 + $0x1a0] sm:$0xff]
        %v380 = vld [vmem:[#allocation5 + $0x1a8] sm:$0xff]
        %v381 = vld [vmem:[#allocation5 + $0x1b0] sm:$0xff]
        %v382 = vld [vmem:[#allocation5 + $0x1b8] sm:$0xff]
        %v383 = vld [vmem:[#allocation5 + $0x1c0] sm:$0xff]
        %v384 = vld [vmem:[#allocation5 + $0x1c8] sm:$0xff]
        %v385 = vld [vmem:[#allocation5 + $0x1d0] sm:$0xff]
        %v386 = vld [vmem:[#allocation5 + $0x1d8] sm:$0xff]
        %v387 = vld [vmem:[#allocation5 + $0x1e0] sm:$0xff]
        %v388 = vld [vmem:[#allocation5 + $0x1e8] sm:$0xff]
        %v389 = vld [vmem:[#allocation5 + $0x1f0] sm:$0xff]
        %v390 = vld [vmem:[#allocation5 + $0x1f8] sm:$0xff]
        %v391 = vld [vmem:[#allocation5 + $0x200] sm:$0xff]
        %v392 = vld [vmem:[#allocation5 + $0x208] sm:$0xff]
        %v393 = vld [vmem:[#allocation5 + $0x210] sm:$0xff]
        %v394 = vld [vmem:[#allocation5 + $0x218] sm:$0xff]
        %v395 = vld [vmem:[#allocation5 + $0x220] sm:$0xff]
        %v396 = vld [vmem:[#allocation5 + $0x228] sm:$0xff]
        %v397 = vld [vmem:[#allocation5 + $0x230] sm:$0xff]
        %v398 = vld [vmem:[#allocation5 + $0x238] sm:$0xff]
        %v399 = vld [vmem:[#allocation5 + $0x240] sm:$0xff]
        %v400 = vld [vmem:[#allocation5 + $0x248] sm:$0xff]
        %v401 = vld [vmem:[#allocation5 + $0x250] sm:$0xff]
        %v402 = vld [vmem:[#allocation5 + $0x258] sm:$0xff]
        %v403 = vld [vmem:[#allocation5 + $0x260] sm:$0xff]
        %v404 = vld [vmem:[#allocation5 + $0x268] sm:$0xff]
        %v405 = vld [vmem:[#allocation5 + $0x270] sm:$0xff]
        %v406 = vld [vmem:[#allocation5 + $0x278] sm:$0xff]
        %v407 = vld [vmem:[#allocation5 + $0x280] sm:$0xff]
        %v408 = vld [vmem:[#allocation5 + $0x288] sm:$0xff]
        %v409 = vld [vmem:[#allocation5 + $0x290] sm:$0xff]
        %v410 = vld [vmem:[#allocation5 + $0x298] sm:$0xff]
        %v411 = vld [vmem:[#allocation5 + $0x2a0] sm:$0xff]
        %v412 = vld [vmem:[#allocation5 + $0x2a8] sm:$0xff]
        %v413 = vld [vmem:[#allocation5 + $0x2b0] sm:$0xff]
        %v414 = vld [vmem:[#allocation5 + $0x2b8] sm:$0xff]
        %v415 = vld [vmem:[#allocation5 + $0x2c0] sm:$0xff]
        %v416 = vld [vmem:[#allocation5 + $0x2c8] sm:$0xff]
        %v417 = vld [vmem:[#allocation5 + $0x2d0] sm:$0xff]
        %v418 = vld [vmem:[#allocation5 + $0x2d8] sm:$0xff]
        %v419 = vld [vmem:[#allocation5 + $0x2e0] sm:$0xff]
        %v420 = vld [vmem:[#allocation5 + $0x2e8] sm:$0xff]
        %v421 = vld [vmem:[#allocation5 + $0x2f0] sm:$0xff]
        %v422 = vld [vmem:[#allocation5 + $0x2f8] sm:$0xff]
        %v423 = vld [vmem:[#allocation5 + $0x300] sm:$0xff]
        %v424 = vld [vmem:[#allocation5 + $0x308] sm:$0xff]
        %v425 = vld [vmem:[#allocation5 + $0x310] sm:$0xff]
        %v426 = vld [vmem:[#allocation5 + $0x318] sm:$0xff]
        %v427 = vld [vmem:[#allocation5 + $0x320] sm:$0xff]
        %v428 = vld [vmem:[#allocation5 + $0x328] sm:$0xff]
        %v429 = vld [vmem:[#allocation5 + $0x330] sm:$0xff]
        %v430 = vld [vmem:[#allocation5 + $0x338] sm:$0xff]
        %v431 = vld [vmem:[#allocation5 + $0x340] sm:$0xff]
        %v432 = vld [vmem:[#allocation5 + $0x348] sm:$0xff]
        %v433 = vld [vmem:[#allocation5 + $0x350] sm:$0xff]
        %v434 = vld [vmem:[#allocation5 + $0x358] sm:$0xff]
        %v435 = vld [vmem:[#allocation5 + $0x360] sm:$0xff]
        %v436 = vld [vmem:[#allocation5 + $0x368] sm:$0xff]
        %v437 = vld [vmem:[#allocation5 + $0x370] sm:$0xff]
        %v438 = vld [vmem:[#allocation5 + $0x378] sm:$0xff]
        %v439 = vld [vmem:[#allocation5 + $0x380] sm:$0xff]
        %v440 = vld [vmem:[#allocation5 + $0x388] sm:$0xff]
        %v441 = vld [vmem:[#allocation5 + $0x390] sm:$0xff]
        %v442 = vld [vmem:[#allocation5 + $0x398] sm:$0xff]
        %v443 = vld [vmem:[#allocation5 + $0x3a0] sm:$0xff]
        %v444 = vld [vmem:[#allocation5 + $0x3a8] sm:$0xff]
        %v445 = vld [vmem:[#allocation5 + $0x3b0] sm:$0xff]
        %v446 = vld [vmem:[#allocation5 + $0x3b8] sm:$0xff]
        %v447 = vld [vmem:[#allocation5 + $0x3c0] sm:$0xff]
        %v448 = vld [vmem:[#allocation5 + $0x3c8] sm:$0xff]
        %v449 = vld [vmem:[#allocation5 + $0x3d0] sm:$0xff]
        %v450 = vld [vmem:[#allocation5 + $0x3d8] sm:$0xff]
        %v451 = vld [vmem:[#allocation5 + $0x3e0] sm:$0xff]
        %v452 = vld [vmem:[#allocation5 + $0x3e8] sm:$0xff]
        %v453 = vld [vmem:[#allocation5 + $0x3f0] sm:$0xff]
        %v454 = vld [vmem:[#allocation5 + $0x3f8] sm:$0xff]
        %455 = vmatprep.subr.mxu0 %v328
        %456 = vmatpush1.msra.mxu0 %v327
        %457 = vmatprep.subr.mxu0 %v330
        %458 = vmatpush1.msra.mxu0 %v329
        %459 = vmatprep.subr.mxu0 %v332
        %460 = vmatpush1.msra.mxu0 %v331
        %461 = vmatprep.subr.mxu0 %v334
        %462 = vmatpush1.msra.mxu0 %v333
        %463 = vmatprep.subr.mxu0 %v336
        %464 = vmatpush1.msra.mxu0 %v335
        %465 = vmatprep.subr.mxu0 %v338
        %466 = vmatpush1.msra.mxu0 %v337
        %467 = vmatprep.subr.mxu0 %v340
        %468 = vmatpush1.msra.mxu0 %v339
        %469 = vmatprep.subr.mxu0 %v342
        %470 = vmatpush1.msra.mxu0 %v341
        %471 = vmatprep.subr.mxu0 %v344
        %472 = vmatpush1.msra.mxu0 %v343
        %473 = vmatprep.subr.mxu0 %v346
        %474 = vmatpush1.msra.mxu0 %v345
        %475 = vmatprep.subr.mxu0 %v348
        %476 = vmatpush1.msra.mxu0 %v347
        %477 = vmatprep.subr.mxu0 %v350
        %478 = vmatpush1.msra.mxu0 %v349
        %479 = vmatprep.subr.mxu0 %v352
        %480 = vmatpush1.msra.mxu0 %v351
        %481 = vmatprep.subr.mxu0 %v354
        %482 = vmatpush1.msra.mxu0 %v353
        %483 = vmatprep.subr.mxu0 %v356
        %484 = vmatpush1.msra.mxu0 %v355
        %485 = vmatprep.subr.mxu0 %v358
        %486 = vmatpush1.msra.mxu0 %v357
        %487 = vmatprep.subr.mxu0 %v360
        %488 = vmatpush1.msra.mxu0 %v359
        %489 = vmatprep.subr.mxu0 %v362
        %490 = vmatpush1.msra.mxu0 %v361
        %491 = vmatprep.subr.mxu0 %v364
        %492 = vmatpush1.msra.mxu0 %v363
        %493 = vmatprep.subr.mxu0 %v366
        %494 = vmatpush1.msra.mxu0 %v365
        %495 = vmatprep.subr.mxu0 %v368
        %496 = vmatpush1.msra.mxu0 %v367
        %497 = vmatprep.subr.mxu0 %v370
        %498 = vmatpush1.msra.mxu0 %v369
        %499 = vmatprep.subr.mxu0 %v372
        %500 = vmatpush1.msra.mxu0 %v371
        %501 = vmatprep.subr.mxu0 %v374
        %502 = vmatpush1.msra.mxu0 %v373
        %503 = vmatprep.subr.mxu0 %v376
        %504 = vmatpush1.msra.mxu0 %v375
        %505 = vmatprep.subr.mxu0 %v378
        %506 = vmatpush1.msra.mxu0 %v377
        %507 = vmatprep.subr.mxu0 %v380
        %508 = vmatpush1.msra.mxu0 %v379
        %509 = vmatprep.subr.mxu0 %v382
        %510 = vmatpush1.msra.mxu0 %v381
        %511 = vmatprep.subr.mxu0 %v384
        %512 = vmatpush1.msra.mxu0 %v383
        %513 = vmatprep.subr.mxu0 %v386
        %514 = vmatpush1.msra.mxu0 %v385
        %515 = vmatprep.subr.mxu0 %v388
        %516 = vmatpush1.msra.mxu0 %v387
        %517 = vmatprep.subr.mxu0 %v390
        %518 = vmatpush1.msra.mxu0 %v389
        %519 = vmatprep.mubr.f32.mxu0 %v264
        %520 = vmatmul.mubr.f32.gmra.mrb[0].mxu0 %v263
        %v521 = vpop.f32.mrb[0].mxu0
        %v522 = vadd.f32 0.0, %v521
        %v523 = vpop.f32.mrb[0].mxu0
        %v524 = vadd.f32 0.0, %v523
        %525 = vmatprep.mubr.f32.mxu0 %v268
        %526 = vmatmul.mubr.f32.gmra.mrb[0].mxu0 %v267
        %v527 = vpop.f32.mrb[0].mxu0
        %v528 = vadd.f32 0.0, %v527
        %v529 = vpop.f32.mrb[0].mxu0
        %v530 = vadd.f32 0.0, %v529
        %531 = vmatprep.mubr.f32.mxu0 %v272
        %532 = vmatmul.mubr.f32.gmra.mrb[0].mxu0 %v271
        %v533 = vpop.f32.mrb[0].mxu0
        %v534 = vadd.f32 0.0, %v533
        %v535 = vpop.f32.mrb[0].mxu0
        %v536 = vadd.f32 0.0, %v535
        %537 = vmatprep.mubr.f32.mxu0 %v276
        %538 = vmatmul.mubr.f32.gmra.mrb[0].mxu0 %v275
        %v539 = vpop.f32.mrb[0].mxu0
        %v540 = vadd.f32 0.0, %v539
        %v541 = vpop.f32.mrb[0].mxu0
        %v542 = vadd.f32 0.0, %v541
        %543 = vmatprep.mubr.f32.mxu0 %v280
        %544 = vmatmul.mubr.f32.gmra.mrb[0].mxu0 %v279
        %v545 = vpop.f32.mrb[0].mxu0
        %v546 = vadd.f32 0.0, %v545
        %v547 = vpop.f32.mrb[0].mxu0
        %v548 = vadd.f32 0.0, %v547
        %549 = vmatprep.mubr.f32.mxu0 %v284
        %550 = vmatmul.mubr.f32.gmra.mrb[0].mxu0 %v283
        %v551 = vpop.f32.mrb[0].mxu0
        %v552 = vadd.f32 0.0, %v551
        %v553 = vpop.f32.mrb[0].mxu0
        %v554 = vadd.f32 0.0, %v553
        %555 = vmatprep.mubr.f32.mxu0 %v288
        %556 = vmatmul.mubr.f32.gmra.mrb[0].mxu0 %v287
        %v557 = vpop.f32.mrb[0].mxu0
        %v558 = vadd.f32 0.0, %v557
        %v559 = vpop.f32.mrb[0].mxu0
        %v560 = vadd.f32 0.0, %v559
        %561 = vmatprep.mubr.f32.mxu0 %v292
        %562 = vmatmul.mubr.f32.gmra.mrb[0].mxu0 %v291
        %v563 = vpop.f32.mrb[0].mxu0
        %v564 = vadd.f32 0.0, %v563
        %v565 = vpop.f32.mrb[0].mxu0
        %v566 = vadd.f32 0.0, %v565
        %567 = vmatprep.mubr.f32.mxu0 %v296
        %568 = vmatmul.mubr.f32.gmra.mrb[0].mxu0 %v295
        %v569 = vpop.f32.mrb[0].mxu0
        %v570 = vadd.f32 0.0, %v569
        %v571 = vpop.f32.mrb[0].mxu0
        %v572 = vadd.f32 0.0, %v571
        %573 = vmatprep.mubr.f32.mxu0 %v300
        %574 = vmatmul.mubr.f32.gmra.mrb[0].mxu0 %v299
        %v575 = vpop.f32.mrb[0].mxu0
        %v576 = vadd.f32 0.0, %v575
        %v577 = vpop.f32.mrb[0].mxu0
        %v578 = vadd.f32 0.0, %v577
        %579 = vmatprep.mubr.f32.mxu0 %v304
        %580 = vmatmul.mubr.f32.gmra.mrb[0].mxu0 %v303
        %v581 = vpop.f32.mrb[0].mxu0
        %v582 = vadd.f32 0.0, %v581
        %v583 = vpop.f32.mrb[0].mxu0
        %v584 = vadd.f32 0.0, %v583
        %585 = vmatprep.mubr.f32.mxu0 %v308
        %586 = vmatmul.mubr.f32.gmra.mrb[0].mxu0 %v307
        %v587 = vpop.f32.mrb[0].mxu0
        %v588 = vadd.f32 0.0, %v587
        %v589 = vpop.f32.mrb[0].mxu0
        %v590 = vadd.f32 0.0, %v589
        %591 = vmatprep.mubr.f32.mxu0 %v312
        %592 = vmatmul.mubr.f32.gmra.mrb[0].mxu0 %v311
        %v593 = vpop.f32.mrb[0].mxu0
        %v594 = vadd.f32 0.0, %v593
        %v595 = vpop.f32.mrb[0].mxu0
        %v596 = vadd.f32 0.0, %v595
        %597 = vmatprep.mubr.f32.mxu0 %v316
        %598 = vmatmul.mubr.f32.gmra.mrb[0].mxu0 %v315
        %v599 = vpop.f32.mrb[0].mxu0
        %v600 = vadd.f32 0.0, %v599
        %v601 = vpop.f32.mrb[0].mxu0
        %v602 = vadd.f32 0.0, %v601
        %603 = vmatprep.mubr.f32.mxu0 %v320
        %604 = vmatmul.mubr.f32.gmra.mrb[0].mxu0 %v319
        %v605 = vpop.f32.mrb[0].mxu0
        %v606 = vadd.f32 0.0, %v605
        %v607 = vpop.f32.mrb[0].mxu0
        %v608 = vadd.f32 0.0, %v607
        %609 = vmatprep.mubr.f32.mxu0 %v324
        %610 = vmatmul.mubr.f32.gmra.mrb[0].mxu0 %v323
        %v611 = vpop.f32.mrb[0].mxu0
        %v612 = vadd.f32 0.0, %v611
        %v613 = vpop.f32.mrb[0].mxu0
        %v614 = vadd.f32 0.0, %v613
        %615 = vdwg.mxu0
        %616 = vmatprep.subr.mxu0 %v392
        %617 = vmatpush1.msra.mxu0 %v391
        %618 = vmatprep.subr.mxu0 %v394
        %619 = vmatpush1.msra.mxu0 %v393
        %620 = vmatprep.subr.mxu0 %v396
        %621 = vmatpush1.msra.mxu0 %v395
        %622 = vmatprep.subr.mxu0 %v398
        %623 = vmatpush1.msra.mxu0 %v397
        %624 = vmatprep.subr.mxu0 %v400
        %625 = vmatpush1.msra.mxu0 %v399
        %626 = vmatprep.subr.mxu0 %v402
        %627 = vmatpush1.msra.mxu0 %v401
        %628 = vmatprep.subr.mxu0 %v404
        %629 = vmatpush1.msra.mxu0 %v403
        %630 = vmatprep.subr.mxu0 %v406
        %631 = vmatpush1.msra.mxu0 %v405
        %632 = vmatprep.subr.mxu0 %v408
        %633 = vmatpush1.msra.mxu0 %v407
        %634 = vmatprep.subr.mxu0 %v410
        %635 = vmatpush1.msra.mxu0 %v409
        %636 = vmatprep.subr.mxu0 %v412
        %637 = vmatpush1.msra.mxu0 %v411
        %638 = vmatprep.subr.mxu0 %v414
        %639 = vmatpush1.msra.mxu0 %v413
        %640 = vmatprep.subr.mxu0 %v416
        %641 = vmatpush1.msra.mxu0 %v415
        %642 = vmatprep.subr.mxu0 %v418
        %643 = vmatpush1.msra.mxu0 %v417
        %644 = vmatprep.subr.mxu0 %v420
        %645 = vmatpush1.msra.mxu0 %v419
        %646 = vmatprep.subr.mxu0 %v422
        %647 = vmatpush1.msra.mxu0 %v421
        %648 = vmatprep.subr.mxu0 %v424
        %649 = vmatpush1.msra.mxu0 %v423
        %650 = vmatprep.subr.mxu0 %v426
        %651 = vmatpush1.msra.mxu0 %v425
        %652 = vmatprep.subr.mxu0 %v428
        %653 = vmatpush1.msra.mxu0 %v427
        %654 = vmatprep.subr.mxu0 %v430
        %655 = vmatpush1.msra.mxu0 %v429
        %656 = vmatprep.subr.mxu0 %v432
        %657 = vmatpush1.msra.mxu0 %v431
        %658 = vmatprep.subr.mxu0 %v434
        %659 = vmatpush1.msra.mxu0 %v433
        %660 = vmatprep.subr.mxu0 %v436
        %661 = vmatpush1.msra.mxu0 %v435
        %662 = vmatprep.subr.mxu0 %v438
        %663 = vmatpush1.msra.mxu0 %v437
        %664 = vmatprep.subr.mxu0 %v440
        %665 = vmatpush1.msra.mxu0 %v439
        %666 = vmatprep.subr.mxu0 %v442
        %667 = vmatpush1.msra.mxu0 %v441
        %668 = vmatprep.subr.mxu0 %v444
        %669 = vmatpush1.msra.mxu0 %v443
        %670 = vmatprep.subr.mxu0 %v446
        %671 = vmatpush1.msra.mxu0 %v445
        %672 = vmatprep.subr.mxu0 %v448
        %673 = vmatpush1.msra.mxu0 %v447
        %674 = vmatprep.subr.mxu0 %v450
        %675 = vmatpush1.msra.mxu0 %v449
        %676 = vmatprep.subr.mxu0 %v452
        %677 = vmatpush1.msra.mxu0 %v451
        %678 = vmatprep.subr.mxu0 %v454
        %679 = vmatpush1.msra.mxu0 %v453
        %680 = vmatprep.mubr.f32.mxu0 %v266
        %681 = vmatmul.mubr.f32.gmra.mrb[0].mxu0 %v265
        %v682 = vpop.f32.mrb[0].mxu0
        %v683 = vadd.f32 %v522, %v682
        %v684 = vpop.f32.mrb[0].mxu0
        %v685 = vadd.f32 %v524, %v684
        %686 = vmatprep.mubr.f32.mxu0 %v270
        %687 = vmatmul.mubr.f32.gmra.mrb[0].mxu0 %v269
        %v688 = vpop.f32.mrb[0].mxu0
        %v689 = vadd.f32 %v528, %v688
        %v690 = vpop.f32.mrb[0].mxu0
        %v691 = vadd.f32 %v530, %v690
        %692 = vmatprep.mubr.f32.mxu0 %v274
        %693 = vmatmul.mubr.f32.gmra.mrb[0].mxu0 %v273
        %v694 = vpop.f32.mrb[0].mxu0
        %v695 = vadd.f32 %v534, %v694
        %v696 = vpop.f32.mrb[0].mxu0
        %v697 = vadd.f32 %v536, %v696
        %698 = vmatprep.mubr.f32.mxu0 %v278
        %699 = vmatmul.mubr.f32.gmra.mrb[0].mxu0 %v277
        %v700 = vpop.f32.mrb[0].mxu0
        %v701 = vadd.f32 %v540, %v700
        %v702 = vpop.f32.mrb[0].mxu0
        %v703 = vadd.f32 %v542, %v702
        %704 = vmatprep.mubr.f32.mxu0 %v282
        %705 = vmatmul.mubr.f32.gmra.mrb[0].mxu0 %v281
        %v706 = vpop.f32.mrb[0].mxu0
        %v707 = vadd.f32 %v546, %v706
        %v708 = vpop.f32.mrb[0].mxu0
        %v709 = vadd.f32 %v548, %v708
        %710 = vmatprep.mubr.f32.mxu0 %v286
        %711 = vmatmul.mubr.f32.gmra.mrb[0].mxu0 %v285
        %v712 = vpop.f32.mrb[0].mxu0
        %v713 = vadd.f32 %v552, %v712
        %v714 = vpop.f32.mrb[0].mxu0
        %v715 = vadd.f32 %v554, %v714
        %716 = vmatprep.mubr.f32.mxu0 %v290
        %717 = vmatmul.mubr.f32.gmra.mrb[0].mxu0 %v289
        %v718 = vpop.f32.mrb[0].mxu0
        %v719 = vadd.f32 %v558, %v718
        %v720 = vpop.f32.mrb[0].mxu0
        %v721 = vadd.f32 %v560, %v720
        %722 = vmatprep.mubr.f32.mxu0 %v294
        %723 = vmatmul.mubr.f32.gmra.mrb[0].mxu0 %v293
        %v724 = vpop.f32.mrb[0].mxu0
        %v725 = vadd.f32 %v564, %v724
        %v726 = vpop.f32.mrb[0].mxu0
        %v727 = vadd.f32 %v566, %v726
        %728 = vmatprep.mubr.f32.mxu0 %v298
        %729 = vmatmul.mubr.f32.gmra.mrb[0].mxu0 %v297
        %v730 = vpop.f32.mrb[0].mxu0
        %v731 = vadd.f32 %v570, %v730
        %v732 = vpop.f32.mrb[0].mxu0
        %v733 = vadd.f32 %v572, %v732
        %734 = vmatprep.mubr.f32.mxu0 %v302
        %735 = vmatmul.mubr.f32.gmra.mrb[0].mxu0 %v301
        %v736 = vpop.f32.mrb[0].mxu0
        %v737 = vadd.f32 %v576, %v736
        %v738 = vpop.f32.mrb[0].mxu0
        %v739 = vadd.f32 %v578, %v738
        %740 = vmatprep.mubr.f32.mxu0 %v306
        %741 = vmatmul.mubr.f32.gmra.mrb[0].mxu0 %v305
        %v742 = vpop.f32.mrb[0].mxu0
        %v743 = vadd.f32 %v582, %v742
        %v744 = vpop.f32.mrb[0].mxu0
        %v745 = vadd.f32 %v584, %v744
        %746 = vmatprep.mubr.f32.mxu0 %v310
        %747 = vmatmul.mubr.f32.gmra.mrb[0].mxu0 %v309
        %v748 = vpop.f32.mrb[0].mxu0
        %v749 = vadd.f32 %v588, %v748
        %v750 = vpop.f32.mrb[0].mxu0
        %v751 = vadd.f32 %v590, %v750
        %752 = vmatprep.mubr.f32.mxu0 %v314
        %753 = vmatmul.mubr.f32.gmra.mrb[0].mxu0 %v313
        %v754 = vpop.f32.mrb[0].mxu0
        %v755 = vadd.f32 %v594, %v754
        %v756 = vpop.f32.mrb[0].mxu0
        %v757 = vadd.f32 %v596, %v756
        %758 = vmatprep.mubr.f32.mxu0 %v318
        %759 = vmatmul.mubr.f32.gmra.mrb[0].mxu0 %v317
        %v760 = vpop.f32.mrb[0].mxu0
        %v761 = vadd.f32 %v600, %v760
        %v762 = vpop.f32.mrb[0].mxu0
        %v763 = vadd.f32 %v602, %v762
        %764 = vmatprep.mubr.f32.mxu0 %v322
        %765 = vmatmul.mubr.f32.gmra.mrb[0].mxu0 %v321
        %v766 = vpop.f32.mrb[0].mxu0
        %v767 = vadd.f32 %v606, %v766
        %v768 = vpop.f32.mrb[0].mxu0
        %v769 = vadd.f32 %v608, %v768
        %770 = vmatprep.mubr.f32.mxu0 %v326
        %771 = vmatmul.mubr.f32.gmra.mrb[0].mxu0 %v325
        %v772 = vpop.f32.mrb[0].mxu0
        %v773 = vadd.f32 %v612, %v772
        %v774 = vpop.f32.mrb[0].mxu0
        %v775 = vadd.f32 %v614, %v774
        %776 = vdwg.mxu0
        %v777 = vmax.f32 %v683, 0.0
        %v778 = vmax.f32 %v685, 0.0
        %v779 = vmax.f32 %v689, 0.0
        %v780 = vmax.f32 %v691, 0.0
        %v781 = vmax.f32 %v695, 0.0
        %v782 = vmax.f32 %v697, 0.0
        %v783 = vmax.f32 %v701, 0.0
        %v784 = vmax.f32 %v703, 0.0
        %v785 = vmax.f32 %v707, 0.0
        %v786 = vmax.f32 %v709, 0.0
        %v787 = vmax.f32 %v713, 0.0
        %v788 = vmax.f32 %v715, 0.0
        %v789 = vmax.f32 %v719, 0.0
        %v790 = vmax.f32 %v721, 0.0
        %v791 = vmax.f32 %v725, 0.0
        %v792 = vmax.f32 %v727, 0.0
        %v793 = vmax.f32 %v731, 0.0
        %v794 = vmax.f32 %v733, 0.0
        %v795 = vmax.f32 %v737, 0.0
        %v796 = vmax.f32 %v739, 0.0
        %v797 = vmax.f32 %v743, 0.0
        %v798 = vmax.f32 %v745, 0.0
        %v799 = vmax.f32 %v749, 0.0
        %v800 = vmax.f32 %v751, 0.0
        %v801 = vmax.f32 %v755, 0.0
        %v802 = vmax.f32 %v757, 0.0
        %v803 = vmax.f32 %v761, 0.0
        %v804 = vmax.f32 %v763, 0.0
        %v805 = vmax.f32 %v767, 0.0
        %v806 = vmax.f32 %v769, 0.0
        %v807 = vmax.f32 %v773, 0.0
        %v808 = vmax.f32 %v775, 0.0
        %v809 = vld [vmem:[#allocation7] sm:$0xff]
        %v810 = vld [vmem:[#allocation7 + $0x8] sm:$0xff]
        %v811 = vld [vmem:[#allocation7 + $0x10] sm:$0xff]
        %v812 = vld [vmem:[#allocation7 + $0x18] sm:$0xff]
        %v813 = vld [vmem:[#allocation7 + $0x20] sm:$0xff]
        %v814 = vld [vmem:[#allocation7 + $0x28] sm:$0xff]
        %v815 = vld [vmem:[#allocation7 + $0x30] sm:$0xff]
        %v816 = vld [vmem:[#allocation7 + $0x38] sm:$0xff]
        %v817 = vld [vmem:[#allocation7 + $0x40] sm:$0xff]
        %v818 = vld [vmem:[#allocation7 + $0x48] sm:$0xff]
        %v819 = vld [vmem:[#allocation7 + $0x50] sm:$0xff]
        %v820 = vld [vmem:[#allocation7 + $0x58] sm:$0xff]
        %v821 = vld [vmem:[#allocation7 + $0x60] sm:$0xff]
        %v822 = vld [vmem:[#allocation7 + $0x68] sm:$0xff]
        %v823 = vld [vmem:[#allocation7 + $0x70] sm:$0xff]
        %v824 = vld [vmem:[#allocation7 + $0x78] sm:$0xff]
        %v825 = vld [vmem:[#allocation7 + $0x80] sm:$0xff]
        %v826 = vld [vmem:[#allocation7 + $0x88] sm:$0xff]
        %v827 = vld [vmem:[#allocation7 + $0x90] sm:$0xff]
        %v828 = vld [vmem:[#allocation7 + $0x98] sm:$0xff]
        %v829 = vld [vmem:[#allocation7 + $0xa0] sm:$0xff]
        %v830 = vld [vmem:[#allocation7 + $0xa8] sm:$0xff]
        %v831 = vld [vmem:[#allocation7 + $0xb0] sm:$0xff]
        %v832 = vld [vmem:[#allocation7 + $0xb8] sm:$0xff]
        %v833 = vld [vmem:[#allocation7 + $0xc0] sm:$0xff]
        %v834 = vld [vmem:[#allocation7 + $0xc8] sm:$0xff]
        %v835 = vld [vmem:[#allocation7 + $0xd0] sm:$0xff]
        %v836 = vld [vmem:[#allocation7 + $0xd8] sm:$0xff]
        %v837 = vld [vmem:[#allocation7 + $0xe0] sm:$0xff]
        %v838 = vld [vmem:[#allocation7 + $0xe8] sm:$0xff]
        %v839 = vld [vmem:[#allocation7 + $0xf0] sm:$0xff]
        %v840 = vld [vmem:[#allocation7 + $0xf8] sm:$0xff]
        %841 = vmatprep.subr.mxu0 0.0
        %842 = vmatpush1.msra.mxu0 %v809
        %843 = vmatprep.subr.mxu0 0.0
        %844 = vmatpush1.msra.mxu0 %v810
        %845 = vmatprep.subr.mxu0 0.0
        %846 = vmatpush1.msra.mxu0 %v811
        %847 = vmatprep.subr.mxu0 0.0
        %848 = vmatpush1.msra.mxu0 %v812
        %849 = vmatprep.subr.mxu0 0.0
        %850 = vmatpush1.msra.mxu0 %v813
        %851 = vmatprep.subr.mxu0 0.0
        %852 = vmatpush1.msra.mxu0 %v814
        %853 = vmatprep.subr.mxu0 0.0
        %854 = vmatpush1.msra.mxu0 %v815
        %855 = vmatprep.subr.mxu0 0.0
        %856 = vmatpush1.msra.mxu0 %v816
        %857 = vmatprep.subr.mxu0 0.0
        %858 = vmatpush1.msra.mxu0 %v817
        %859 = vmatprep.subr.mxu0 0.0
        %860 = vmatpush1.msra.mxu0 %v818
        %861 = vmatprep.subr.mxu0 0.0
        %862 = vmatpush1.msra.mxu0 %v819
        %863 = vmatprep.subr.mxu0 0.0
        %864 = vmatpush1.msra.mxu0 %v820
        %865 = vmatprep.subr.mxu0 0.0
        %866 = vmatpush1.msra.mxu0 %v821
        %867 = vmatprep.subr.mxu0 0.0
        %868 = vmatpush1.msra.mxu0 %v822
        %869 = vmatprep.subr.mxu0 0.0
        %870 = vmatpush1.msra.mxu0 %v823
        %871 = vmatprep.subr.mxu0 0.0
        %872 = vmatpush1.msra.mxu0 %v824
        %873 = vmatprep.subr.mxu0 0.0
        %874 = vmatpush1.msra.mxu0 %v825
        %875 = vmatprep.subr.mxu0 0.0
        %876 = vmatpush1.msra.mxu0 %v826
        %877 = vmatprep.subr.mxu0 0.0
        %878 = vmatpush1.msra.mxu0 %v827
        %879 = vmatprep.subr.mxu0 0.0
        %880 = vmatpush1.msra.mxu0 %v828
        %881 = vmatprep.subr.mxu0 0.0
        %882 = vmatpush1.msra.mxu0 %v829
        %883 = vmatprep.subr.mxu0 0.0
        %884 = vmatpush1.msra.mxu0 %v830
        %885 = vmatprep.subr.mxu0 0.0
        %886 = vmatpush1.msra.mxu0 %v831
        %887 = vmatprep.subr.mxu0 0.0
        %888 = vmatpush1.msra.mxu0 %v832
        %889 = vmatprep.subr.mxu0 0.0
        %890 = vmatpush1.msra.mxu0 %v833
        %891 = vmatprep.subr.mxu0 0.0
        %892 = vmatpush1.msra.mxu0 %v834
        %893 = vmatprep.subr.mxu0 0.0
        %894 = vmatpush1.msra.mxu0 %v835
        %895 = vmatprep.subr.mxu0 0.0
        %896 = vmatpush1.msra.mxu0 %v836
        %897 = vmatprep.subr.mxu0 0.0
        %898 = vmatpush1.msra.mxu0 %v837
        %899 = vmatprep.subr.mxu0 0.0
        %900 = vmatpush1.msra.mxu0 %v838
        %901 = vmatprep.subr.mxu0 0.0
        %902 = vmatpush1.msra.mxu0 %v839
        %903 = vmatprep.subr.mxu0 0.0
        %904 = vmatpush1.msra.mxu0 %v840
        %905 = vmatprep.mubr.f32.mxu0 %v778
        %906 = vmatmul.mubr.f32.gmra.mrb[0].mxu0 %v777
        %v907 = vpop.f32.mrb[0].mxu0
        %v908 = vadd.f32 0.0, %v907
        %v909 = vpop.f32.mrb[0].mxu0
        %910 = vmatprep.mubr.f32.mxu0 %v780
        %911 = vmatmul.mubr.f32.gmra.mrb[0].mxu0 %v779
        %v912 = vpop.f32.mrb[0].mxu0
        %v913 = vadd.f32 0.0, %v912
        %v914 = vpop.f32.mrb[0].mxu0
        %915 = vmatprep.mubr.f32.mxu0 %v782
        %916 = vmatmul.mubr.f32.gmra.mrb[0].mxu0 %v781
        %v917 = vpop.f32.mrb[0].mxu0
        %v918 = vadd.f32 0.0, %v917
        %v919 = vpop.f32.mrb[0].mxu0
        %920 = vmatprep.mubr.f32.mxu0 %v784
        %921 = vmatmul.mubr.f32.gmra.mrb[0].mxu0 %v783
        %v922 = vpop.f32.mrb[0].mxu0
        %v923 = vadd.f32 0.0, %v922
        %v924 = vpop.f32.mrb[0].mxu0
        %925 = vmatprep.mubr.f32.mxu0 %v786
        %926 = vmatmul.mubr.f32.gmra.mrb[0].mxu0 %v785
        %v927 = vpop.f32.mrb[0].mxu0
        %v928 = vadd.f32 0.0, %v927
        %v929 = vpop.f32.mrb[0].mxu0
        %930 = vmatprep.mubr.f32.mxu0 %v788
        %931 = vmatmul.mubr.f32.gmra.mrb[0].mxu0 %v787
        %v932 = vpop.f32.mrb[0].mxu0
        %v933 = vadd.f32 0.0, %v932
        %v934 = vpop.f32.mrb[0].mxu0
        %935 = vmatprep.mubr.f32.mxu0 %v790
        %936 = vmatmul.mubr.f32.gmra.mrb[0].mxu0 %v789
        %v937 = vpop.f32.mrb[0].mxu0
        %v938 = vadd.f32 0.0, %v937
        %v939 = vpop.f32.mrb[0].mxu0
        %940 = vmatprep.mubr.f32.mxu0 %v792
        %941 = vmatmul.mubr.f32.gmra.mrb[0].mxu0 %v791
        %v942 = vpop.f32.mrb[0].mxu0
        %v943 = vadd.f32 0.0, %v942
        %v944 = vpop.f32.mrb[0].mxu0
        %945 = vmatprep.mubr.f32.mxu0 %v794
        %946 = vmatmul.mubr.f32.gmra.mrb[0].mxu0 %v793
        %v947 = vpop.f32.mrb[0].mxu0
        %v948 = vadd.f32 0.0, %v947
        %v949 = vpop.f32.mrb[0].mxu0
        %950 = vmatprep.mubr.f32.mxu0 %v796
        %951 = vmatmul.mubr.f32.gmra.mrb[0].mxu0 %v795
        %v952 = vpop.f32.mrb[0].mxu0
        %v953 = vadd.f32 0.0, %v952
        %v954 = vpop.f32.mrb[0].mxu0
        %955 = vmatprep.mubr.f32.mxu0 %v798
        %956 = vmatmul.mubr.f32.gmra.mrb[0].mxu0 %v797
        %v957 = vpop.f32.mrb[0].mxu0
        %v958 = vadd.f32 0.0, %v957
        %v959 = vpop.f32.mrb[0].mxu0
        %960 = vmatprep.mubr.f32.mxu0 %v800
        %961 = vmatmul.mubr.f32.gmra.mrb[0].mxu0 %v799
        %v962 = vpop.f32.mrb[0].mxu0
        %v963 = vadd.f32 0.0, %v962
        %v964 = vpop.f32.mrb[0].mxu0
        %965 = vmatprep.mubr.f32.mxu0 %v802
        %966 = vmatmul.mubr.f32.gmra.mrb[0].mxu0 %v801
        %v967 = vpop.f32.mrb[0].mxu0
        %v968 = vadd.f32 0.0, %v967
        %v969 = vpop.f32.mrb[0].mxu0
        %970 = vmatprep.mubr.f32.mxu0 %v804
        %971 = vmatmul.mubr.f32.gmra.mrb[0].mxu0 %v803
        %v972 = vpop.f32.mrb[0].mxu0
        %v973 = vadd.f32 0.0, %v972
        %v974 = vpop.f32.mrb[0].mxu0
        %975 = vmatprep.mubr.f32.mxu0 %v806
        %976 = vmatmul.mubr.f32.gmra.mrb[0].mxu0 %v805
        %v977 = vpop.f32.mrb[0].mxu0
        %v978 = vadd.f32 0.0, %v977
        %v979 = vpop.f32.mrb[0].mxu0
        %980 = vmatprep.mubr.f32.mxu0 %v808
        %981 = vmatmul.mubr.f32.gmra.mrb[0].mxu0 %v807
        %v982 = vpop.f32.mrb[0].mxu0
        %v983 = vadd.f32 0.0, %v982
        %v984 = vpop.f32.mrb[0].mxu0
        %985 = vdwg.mxu0
        %v986 = vmax.f32 %v908, 0.0
        %v987 = vmax.f32 %v913, 0.0
        %v988 = vmax.f32 %v918, 0.0
        %v989 = vmax.f32 %v923, 0.0
        %v990 = vmax.f32 %v928, 0.0
        %v991 = vmax.f32 %v933, 0.0
        %v992 = vmax.f32 %v938, 0.0
        %v993 = vmax.f32 %v943, 0.0
        %v994 = vmax.f32 %v948, 0.0
        %v995 = vmax.f32 %v953, 0.0
        %v996 = vmax.f32 %v958, 0.0
        %v997 = vmax.f32 %v963, 0.0
        %v998 = vmax.f32 %v968, 0.0
        %v999 = vmax.f32 %v973, 0.0
        %v1000 = vmax.f32 %v978, 0.0
        %v1001 = vmax.f32 %v983, 0.0
        %v1002 = vld [vmem:[#allocation8] sm:$0xff]
        %v1003 = vld [vmem:[#allocation8 + $0x8] sm:$0xff]
        %v1004 = vld [vmem:[#allocation8 + $0x10] sm:$0xff]
        %v1005 = vld [vmem:[#allocation8 + $0x18] sm:$0xff]
        %v1006 = vld [vmem:[#allocation8 + $0x20] sm:$0xff]
        %v1007 = vld [vmem:[#allocation8 + $0x28] sm:$0xff]
        %v1008 = vld [vmem:[#allocation8 + $0x30] sm:$0xff]
        %v1009 = vld [vmem:[#allocation8 + $0x38] sm:$0xff]
        %v1010 = vld [vmem:[#allocation8 + $0x40] sm:$0xff]
        %v1011 = vld [vmem:[#allocation8 + $0x48] sm:$0xff]
        %v1012 = vld [vmem:[#allocation8 + $0x50] sm:$0xff]
        %v1013 = vld [vmem:[#allocation8 + $0x58] sm:$0xff]
        %v1014 = vld [vmem:[#allocation8 + $0x60] sm:$0xff]
        %v1015 = vld [vmem:[#allocation8 + $0x68] sm:$0xff]
        %v1016 = vld [vmem:[#allocation8 + $0x70] sm:$0xff]
        %v1017 = vld [vmem:[#allocation8 + $0x78] sm:$0xff]
        %v1018 = vld [vmem:[#allocation8 + $0x80] sm:$0xff]
        %v1019 = vld [vmem:[#allocation8 + $0x88] sm:$0xff]
        %v1020 = vld [vmem:[#allocation8 + $0x90] sm:$0xff]
        %v1021 = vld [vmem:[#allocation8 + $0x98] sm:$0xff]
        %v1022 = vld [vmem:[#allocation8 + $0xa0] sm:$0xff]
        %v1023 = vld [vmem:[#allocation8 + $0xa8] sm:$0xff]
        %v1024 = vld [vmem:[#allocation8 + $0xb0] sm:$0xff]
        %v1025 = vld [vmem:[#allocation8 + $0xb8] sm:$0xff]
        %v1026 = vld [vmem:[#allocation8 + $0xc0] sm:$0xff]
        %v1027 = vld [vmem:[#allocation8 + $0xc8] sm:$0xff]
        %v1028 = vld [vmem:[#allocation8 + $0xd0] sm:$0xff]
        %v1029 = vld [vmem:[#allocation8 + $0xd8] sm:$0xff]
        %v1030 = vld [vmem:[#allocation8 + $0xe0] sm:$0xff]
        %v1031 = vld [vmem:[#allocation8 + $0xe8] sm:$0xff]
        %v1032 = vld [vmem:[#allocation8 + $0xf0] sm:$0xff]
        %v1033 = vld [vmem:[#allocation8 + $0xf8] sm:$0xff]
        %v1034 = vld [vmem:[#allocation8 + $0x100] sm:$0xff]
        %v1035 = vld [vmem:[#allocation8 + $0x108] sm:$0xff]
        %v1036 = vld [vmem:[#allocation8 + $0x110] sm:$0xff]
        %v1037 = vld [vmem:[#allocation8 + $0x118] sm:$0xff]
        %v1038 = vld [vmem:[#allocation8 + $0x120] sm:$0xff]
        %v1039 = vld [vmem:[#allocation8 + $0x128] sm:$0xff]
        %v1040 = vld [vmem:[#allocation8 + $0x130] sm:$0xff]
        %v1041 = vld [vmem:[#allocation8 + $0x138] sm:$0xff]
        %v1042 = vld [vmem:[#allocation8 + $0x140] sm:$0xff]
        %v1043 = vld [vmem:[#allocation8 + $0x148] sm:$0xff]
        %v1044 = vld [vmem:[#allocation8 + $0x150] sm:$0xff]
        %v1045 = vld [vmem:[#allocation8 + $0x158] sm:$0xff]
        %v1046 = vld [vmem:[#allocation8 + $0x160] sm:$0xff]
        %v1047 = vld [vmem:[#allocation8 + $0x168] sm:$0xff]
        %v1048 = vld [vmem:[#allocation8 + $0x170] sm:$0xff]
        %v1049 = vld [vmem:[#allocation8 + $0x178] sm:$0xff]
        %v1050 = vld [vmem:[#allocation8 + $0x180] sm:$0xff]
        %v1051 = vld [vmem:[#allocation8 + $0x188] sm:$0xff]
        %v1052 = vld [vmem:[#allocation8 + $0x190] sm:$0xff]
        %v1053 = vld [vmem:[#allocation8 + $0x198] sm:$0xff]
        %v1054 = vld [vmem:[#allocation8 + $0x1a0] sm:$0xff]
        %v1055 = vld [vmem:[#allocation8 + $0x1a8] sm:$0xff]
        %v1056 = vld [vmem:[#allocation8 + $0x1b0] sm:$0xff]
        %v1057 = vld [vmem:[#allocation8 + $0x1b8] sm:$0xff]
        %v1058 = vld [vmem:[#allocation8 + $0x1c0] sm:$0xff]
        %v1059 = vld [vmem:[#allocation8 + $0x1c8] sm:$0xff]
        %v1060 = vld [vmem:[#allocation8 + $0x1d0] sm:$0xff]
        %v1061 = vld [vmem:[#allocation8 + $0x1d8] sm:$0xff]
        %v1062 = vld [vmem:[#allocation8 + $0x1e0] sm:$0xff]
        %v1063 = vld [vmem:[#allocation8 + $0x1e8] sm:$0xff]
        %v1064 = vld [vmem:[#allocation8 + $0x1f0] sm:$0xff]
        %v1065 = vld [vmem:[#allocation8 + $0x1f8] sm:$0xff]
        %v1066 = vld [vmem:[#allocation8 + $0x200] sm:$0xff]
        %v1067 = vld [vmem:[#allocation8 + $0x208] sm:$0xff]
        %v1068 = vld [vmem:[#allocation8 + $0x210] sm:$0xff]
        %v1069 = vld [vmem:[#allocation8 + $0x218] sm:$0xff]
        %v1070 = vld [vmem:[#allocation8 + $0x220] sm:$0xff]
        %v1071 = vld [vmem:[#allocation8 + $0x228] sm:$0xff]
        %v1072 = vld [vmem:[#allocation8 + $0x230] sm:$0xff]
        %v1073 = vld [vmem:[#allocation8 + $0x238] sm:$0xff]
        %v1074 = vld [vmem:[#allocation8 + $0x240] sm:$0xff]
        %v1075 = vld [vmem:[#allocation8 + $0x248] sm:$0xff]
        %v1076 = vld [vmem:[#allocation8 + $0x250] sm:$0xff]
        %v1077 = vld [vmem:[#allocation8 + $0x258] sm:$0xff]
        %v1078 = vld [vmem:[#allocation8 + $0x260] sm:$0xff]
        %v1079 = vld [vmem:[#allocation8 + $0x268] sm:$0xff]
        %v1080 = vld [vmem:[#allocation8 + $0x270] sm:$0xff]
        %v1081 = vld [vmem:[#allocation8 + $0x278] sm:$0xff]
        %1082 = vmatprep.subr.mxu0 %v1003
        %1083 = vmatpush1.msra.mxu0 %v1002
        %1084 = vmatprep.subr.mxu0 %v1008
        %1085 = vmatpush1.msra.mxu0 %v1007
        %1086 = vmatprep.subr.mxu0 %v1013
        %1087 = vmatpush1.msra.mxu0 %v1012
        %1088 = vmatprep.subr.mxu0 %v1018
        %1089 = vmatpush1.msra.mxu0 %v1017
        %1090 = vmatprep.subr.mxu0 %v1023
        %1091 = vmatpush1.msra.mxu0 %v1022
        %1092 = vmatprep.subr.mxu0 %v1028
        %1093 = vmatpush1.msra.mxu0 %v1027
        %1094 = vmatprep.subr.mxu0 %v1033
        %1095 = vmatpush1.msra.mxu0 %v1032
        %1096 = vmatprep.subr.mxu0 %v1038
        %1097 = vmatpush1.msra.mxu0 %v1037
        %1098 = vmatprep.subr.mxu0 %v1043
        %1099 = vmatpush1.msra.mxu0 %v1042
        %1100 = vmatprep.subr.mxu0 %v1048
        %1101 = vmatpush1.msra.mxu0 %v1047
        %1102 = vmatprep.subr.mxu0 %v1053
        %1103 = vmatpush1.msra.mxu0 %v1052
        %1104 = vmatprep.subr.mxu0 %v1058
        %1105 = vmatpush1.msra.mxu0 %v1057
        %1106 = vmatprep.subr.mxu0 %v1063
        %1107 = vmatpush1.msra.mxu0 %v1062
        %1108 = vmatprep.subr.mxu0 %v1068
        %1109 = vmatpush1.msra.mxu0 %v1067
        %1110 = vmatprep.subr.mxu0 %v1073
        %1111 = vmatpush1.msra.mxu0 %v1072
        %1112 = vmatprep.subr.mxu0 %v1078
        %1113 = vmatpush1.msra.mxu0 %v1077
        %1114 = vmatprep.subr.mxu0 0.0
        %1115 = vmatpush1.msra.mxu0 0.0
        %1116 = vmatprep.subr.mxu0 0.0
        %1117 = vmatpush1.msra.mxu0 0.0
        %1118 = vmatprep.subr.mxu0 0.0
        %1119 = vmatpush1.msra.mxu0 0.0
        %1120 = vmatprep.subr.mxu0 0.0
        %1121 = vmatpush1.msra.mxu0 0.0
        %1122 = vmatprep.subr.mxu0 0.0
        %1123 = vmatpush1.msra.mxu0 0.0
        %1124 = vmatprep.subr.mxu0 0.0
        %1125 = vmatpush1.msra.mxu0 0.0
        %1126 = vmatprep.subr.mxu0 0.0
        %1127 = vmatpush1.msra.mxu0 0.0
        %1128 = vmatprep.subr.mxu0 0.0
        %1129 = vmatpush1.msra.mxu0 0.0
        %1130 = vmatprep.subr.mxu0 0.0
        %1131 = vmatpush1.msra.mxu0 0.0
        %1132 = vmatprep.subr.mxu0 0.0
        %1133 = vmatpush1.msra.mxu0 0.0
        %1134 = vmatprep.subr.mxu0 0.0
        %1135 = vmatpush1.msra.mxu0 0.0
        %1136 = vmatprep.subr.mxu0 0.0
        %1137 = vmatpush1.msra.mxu0 0.0
        %1138 = vmatprep.subr.mxu0 0.0
        %1139 = vmatpush1.msra.mxu0 0.0
        %1140 = vmatprep.subr.mxu0 0.0
        %1141 = vmatpush1.msra.mxu0 0.0
        %1142 = vmatprep.subr.mxu0 0.0
        %1143 = vmatpush1.msra.mxu0 0.0
        %1144 = vmatprep.subr.mxu0 0.0
        %1145 = vmatpush1.msra.mxu0 0.0
        %1146 = vmatprep.mubr.f32.mxu0 0.0
        %1147 = vmatmul.mubr.f32.gmra.mrb[0].mxu0 %v986
        %v1148 = vpop.f32.mrb[0].mxu0
        %v1149 = vadd.f32 0.0, %v1148
        %v1150 = vpop.f32.mrb[0].mxu0
        %v1151 = vadd.f32 0.0, %v1150
        %1152 = vmatprep.mubr.f32.mxu0 0.0
        %1153 = vmatmul.mubr.f32.gmra.mrb[0].mxu0 %v987
        %v1154 = vpop.f32.mrb[0].mxu0
        %v1155 = vadd.f32 0.0, %v1154
        %v1156 = vpop.f32.mrb[0].mxu0
        %v1157 = vadd.f32 0.0, %v1156
        %1158 = vmatprep.mubr.f32.mxu0 0.0
        %1159 = vmatmul.mubr.f32.gmra.mrb[0].mxu0 %v988
        %v1160 = vpop.f32.mrb[0].mxu0
        %v1161 = vadd.f32 0.0, %v1160
        %v1162 = vpop.f32.mrb[0].mxu0
        %v1163 = vadd.f32 0.0, %v1162
        %1164 = vmatprep.mubr.f32.mxu0 0.0
        %1165 = vmatmul.mubr.f32.gmra.mrb[0].mxu0 %v989
        %v1166 = vpop.f32.mrb[0].mxu0
        %v1167 = vadd.f32 0.0, %v1166
        %v1168 = vpop.f32.mrb[0].mxu0
        %v1169 = vadd.f32 0.0, %v1168
        %1170 = vmatprep.mubr.f32.mxu0 0.0
        %1171 = vmatmul.mubr.f32.gmra.mrb[0].mxu0 %v990
        %v1172 = vpop.f32.mrb[0].mxu0
        %v1173 = vadd.f32 0.0, %v1172
        %v1174 = vpop.f32.mrb[0].mxu0
        %v1175 = vadd.f32 0.0, %v1174
        %1176 = vmatprep.mubr.f32.mxu0 0.0
        %1177 = vmatmul.mubr.f32.gmra.mrb[0].mxu0 %v991
        %v1178 = vpop.f32.mrb[0].mxu0
        %v1179 = vadd.f32 0.0, %v1178
        %v1180 = vpop.f32.mrb[0].mxu0
        %v1181 = vadd.f32 0.0, %v1180
        %1182 = vmatprep.mubr.f32.mxu0 0.0
        %1183 = vmatmul.mubr.f32.gmra.mrb[0].mxu0 %v992
        %v1184 = vpop.f32.mrb[0].mxu0
        %v1185 = vadd.f32 0.0, %v1184
        %v1186 = vpop.f32.mrb[0].mxu0
        %v1187 = vadd.f32 0.0, %v1186
        %1188 = vmatprep.mubr.f32.mxu0 0.0
        %1189 = vmatmul.mubr.f32.gmra.mrb[0].mxu0 %v993
        %v1190 = vpop.f32.mrb[0].mxu0
        %v1191 = vadd.f32 0.0, %v1190
        %v1192 = vpop.f32.mrb[0].mxu0
        %v1193 = vadd.f32 0.0, %v1192
        %1194 = vmatprep.mubr.f32.mxu0 0.0
        %1195 = vmatmul.mubr.f32.gmra.mrb[0].mxu0 %v994
        %v1196 = vpop.f32.mrb[0].mxu0
        %v1197 = vadd.f32 0.0, %v1196
        %v1198 = vpop.f32.mrb[0].mxu0
        %v1199 = vadd.f32 0.0, %v1198
        %1200 = vmatprep.mubr.f32.mxu0 0.0
        %1201 = vmatmul.mubr.f32.gmra.mrb[0].mxu0 %v995
        %v1202 = vpop.f32.mrb[0].mxu0
        %v1203 = vadd.f32 0.0, %v1202
        %v1204 = vpop.f32.mrb[0].mxu0
        %v1205 = vadd.f32 0.0, %v1204
        %1206 = vmatprep.mubr.f32.mxu0 0.0
        %1207 = vmatmul.mubr.f32.gmra.mrb[0].mxu0 %v996
        %v1208 = vpop.f32.mrb[0].mxu0
        %v1209 = vadd.f32 0.0, %v1208
        %v1210 = vpop.f32.mrb[0].mxu0
        %v1211 = vadd.f32 0.0, %v1210
        %1212 = vmatprep.mubr.f32.mxu0 0.0
        %1213 = vmatmul.mubr.f32.gmra.mrb[0].mxu0 %v997
        %v1214 = vpop.f32.mrb[0].mxu0
        %v1215 = vadd.f32 0.0, %v1214
        %v1216 = vpop.f32.mrb[0].mxu0
        %v1217 = vadd.f32 0.0, %v1216
        %1218 = vmatprep.mubr.f32.mxu0 0.0
        %1219 = vmatmul.mubr.f32.gmra.mrb[0].mxu0 %v998
        %v1220 = vpop.f32.mrb[0].mxu0
        %v1221 = vadd.f32 0.0, %v1220
        %v1222 = vpop.f32.mrb[0].mxu0
        %v1223 = vadd.f32 0.0, %v1222
        %1224 = vmatprep.mubr.f32.mxu0 0.0
        %1225 = vmatmul.mubr.f32.gmra.mrb[0].mxu0 %v999
        %v1226 = vpop.f32.mrb[0].mxu0
        %v1227 = vadd.f32 0.0, %v1226
        %v1228 = vpop.f32.mrb[0].mxu0
        %v1229 = vadd.f32 0.0, %v1228
        %1230 = vmatprep.mubr.f32.mxu0 0.0
        %1231 = vmatmul.mubr.f32.gmra.mrb[0].mxu0 %v1000
        %v1232 = vpop.f32.mrb[0].mxu0
        %v1233 = vadd.f32 0.0, %v1232
        %v1234 = vpop.f32.mrb[0].mxu0
        %v1235 = vadd.f32 0.0, %v1234
        %1236 = vmatprep.mubr.f32.mxu0 0.0
        %1237 = vmatmul.mubr.f32.gmra.mrb[0].mxu0 %v1001
        %v1238 = vpop.f32.mrb[0].mxu0
        %v1239 = vadd.f32 0.0, %v1238
        %v1240 = vpop.f32.mrb[0].mxu0
        %v1241 = vadd.f32 0.0, %v1240
        %1242 = vdwg.mxu0
        %1243 = vmatprep.subr.mxu0 %v1005
        %1244 = vmatpush1.msra.mxu0 %v1004
        %1245 = vmatprep.subr.mxu0 %v1010
        %1246 = vmatpush1.msra.mxu0 %v1009
        %1247 = vmatprep.subr.mxu0 %v1015
        %1248 = vmatpush1.msra.mxu0 %v1014
        %1249 = vmatprep.subr.mxu0 %v1020
        %1250 = vmatpush1.msra.mxu0 %v1019
        %1251 = vmatprep.subr.mxu0 %v1025
        %1252 = vmatpush1.msra.mxu0 %v1024
        %1253 = vmatprep.subr.mxu0 %v1030
        %1254 = vmatpush1.msra.mxu0 %v1029
        %1255 = vmatprep.subr.mxu0 %v1035
        %1256 = vmatpush1.msra.mxu0 %v1034
        %1257 = vmatprep.subr.mxu0 %v1040
        %1258 = vmatpush1.msra.mxu0 %v1039
        %1259 = vmatprep.subr.mxu0 %v1045
        %1260 = vmatpush1.msra.mxu0 %v1044
        %1261 = vmatprep.subr.mxu0 %v1050
        %1262 = vmatpush1.msra.mxu0 %v1049
        %1263 = vmatprep.subr.mxu0 %v1055
        %1264 = vmatpush1.msra.mxu0 %v1054
        %1265 = vmatprep.subr.mxu0 %v1060
        %1266 = vmatpush1.msra.mxu0 %v1059
        %1267 = vmatprep.subr.mxu0 %v1065
        %1268 = vmatpush1.msra.mxu0 %v1064
        %1269 = vmatprep.subr.mxu0 %v1070
        %1270 = vmatpush1.msra.mxu0 %v1069
        %1271 = vmatprep.subr.mxu0 %v1075
        %1272 = vmatpush1.msra.mxu0 %v1074
        %1273 = vmatprep.subr.mxu0 %v1080
        %1274 = vmatpush1.msra.mxu0 %v1079
        %1275 = vmatprep.subr.mxu0 0.0
        %1276 = vmatpush1.msra.mxu0 0.0
        %1277 = vmatprep.subr.mxu0 0.0
        %1278 = vmatpush1.msra.mxu0 0.0
        %1279 = vmatprep.subr.mxu0 0.0
        %1280 = vmatpush1.msra.mxu0 0.0
        %1281 = vmatprep.subr.mxu0 0.0
        %1282 = vmatpush1.msra.mxu0 0.0
        %1283 = vmatprep.subr.mxu0 0.0
        %1284 = vmatpush1.msra.mxu0 0.0
        %1285 = vmatprep.subr.mxu0 0.0
        %1286 = vmatpush1.msra.mxu0 0.0
        %1287 = vmatprep.subr.mxu0 0.0
        %1288 = vmatpush1.msra.mxu0 0.0
        %1289 = vmatprep.subr.mxu0 0.0
        %1290 = vmatpush1.msra.mxu0 0.0
        %1291 = vmatprep.subr.mxu0 0.0
        %1292 = vmatpush1.msra.mxu0 0.0
        %1293 = vmatprep.subr.mxu0 0.0
        %1294 = vmatpush1.msra.mxu0 0.0
        %1295 = vmatprep.subr.mxu0 0.0
        %1296 = vmatpush1.msra.mxu0 0.0
        %1297 = vmatprep.subr.mxu0 0.0
        %1298 = vmatpush1.msra.mxu0 0.0
        %1299 = vmatprep.subr.mxu0 0.0
        %1300 = vmatpush1.msra.mxu0 0.0
        %1301 = vmatprep.subr.mxu0 0.0
        %1302 = vmatpush1.msra.mxu0 0.0
        %1303 = vmatprep.subr.mxu0 0.0
        %1304 = vmatpush1.msra.mxu0 0.0
        %1305 = vmatprep.subr.mxu0 0.0
        %1306 = vmatpush1.msra.mxu0 0.0
        %1307 = vmatprep.mubr.f32.mxu0 0.0
        %1308 = vmatmul.mubr.f32.gmra.mrb[0].mxu0 %v986
        %v1309 = vpop.f32.mrb[0].mxu0
        %v1310 = vadd.f32 0.0, %v1309
        %v1311 = vpop.f32.mrb[0].mxu0
        %v1312 = vadd.f32 0.0, %v1311
        %1313 = vmatprep.mubr.f32.mxu0 0.0
        %1314 = vmatmul.mubr.f32.gmra.mrb[0].mxu0 %v987
        %v1315 = vpop.f32.mrb[0].mxu0
        %v1316 = vadd.f32 0.0, %v1315
        %v1317 = vpop.f32.mrb[0].mxu0
        %v1318 = vadd.f32 0.0, %v1317
        %1319 = vmatprep.mubr.f32.mxu0 0.0
        %1320 = vmatmul.mubr.f32.gmra.mrb[0].mxu0 %v988
        %v1321 = vpop.f32.mrb[0].mxu0
        %v1322 = vadd.f32 0.0, %v1321
        %v1323 = vpop.f32.mrb[0].mxu0
        %v1324 = vadd.f32 0.0, %v1323
        %1325 = vmatprep.mubr.f32.mxu0 0.0
        %1326 = vmatmul.mubr.f32.gmra.mrb[0].mxu0 %v989
        %v1327 = vpop.f32.mrb[0].mxu0
        %v1328 = vadd.f32 0.0, %v1327
        %v1329 = vpop.f32.mrb[0].mxu0
        %v1330 = vadd.f32 0.0, %v1329
        %1331 = vmatprep.mubr.f32.mxu0 0.0
        %1332 = vmatmul.mubr.f32.gmra.mrb[0].mxu0 %v990
        %v1333 = vpop.f32.mrb[0].mxu0
        %v1334 = vadd.f32 0.0, %v1333
        %v1335 = vpop.f32.mrb[0].mxu0
        %v1336 = vadd.f32 0.0, %v1335
        %1337 = vmatprep.mubr.f32.mxu0 0.0
        %1338 = vmatmul.mubr.f32.gmra.mrb[0].mxu0 %v991
        %v1339 = vpop.f32.mrb[0].mxu0
        %v1340 = vadd.f32 0.0, %v1339
        %v1341 = vpop.f32.mrb[0].mxu0
        %v1342 = vadd.f32 0.0, %v1341
        %1343 = vmatprep.mubr.f32.mxu0 0.0
        %1344 = vmatmul.mubr.f32.gmra.mrb[0].mxu0 %v992
        %v1345 = vpop.f32.mrb[0].mxu0
        %v1346 = vadd.f32 0.0, %v1345
        %v1347 = vpop.f32.mrb[0].mxu0
        %v1348 = vadd.f32 0.0, %v1347
        %1349 = vmatprep.mubr.f32.mxu0 0.0
        %1350 = vmatmul.mubr.f32.gmra.mrb[0].mxu0 %v993
        %v1351 = vpop.f32.mrb[0].mxu0
        %v1352 = vadd.f32 0.0, %v1351
        %v1353 = vpop.f32.mrb[0].mxu0
        %v1354 = vadd.f32 0.0, %v1353
        %1355 = vmatprep.mubr.f32.mxu0 0.0
        %1356 = vmatmul.mubr.f32.gmra.mrb[0].mxu0 %v994
        %v1357 = vpop.f32.mrb[0].mxu0
        %v1358 = vadd.f32 0.0, %v1357
        %v1359 = vpop.f32.mrb[0].mxu0
        %v1360 = vadd.f32 0.0, %v1359
        %1361 = vmatprep.mubr.f32.mxu0 0.0
        %1362 = vmatmul.mubr.f32.gmra.mrb[0].mxu0 %v995
        %v1363 = vpop.f32.mrb[0].mxu0
        %v1364 = vadd.f32 0.0, %v1363
        %v1365 = vpop.f32.mrb[0].mxu0
        %v1366 = vadd.f32 0.0, %v1365
        %1367 = vmatprep.mubr.f32.mxu0 0.0
        %1368 = vmatmul.mubr.f32.gmra.mrb[0].mxu0 %v996
        %v1369 = vpop.f32.mrb[0].mxu0
        %v1370 = vadd.f32 0.0, %v1369
        %v1371 = vpop.f32.mrb[0].mxu0
        %v1372 = vadd.f32 0.0, %v1371
        %1373 = vmatprep.mubr.f32.mxu0 0.0
        %1374 = vmatmul.mubr.f32.gmra.mrb[0].mxu0 %v997
        %v1375 = vpop.f32.mrb[0].mxu0
        %v1376 = vadd.f32 0.0, %v1375
        %v1377 = vpop.f32.mrb[0].mxu0
        %v1378 = vadd.f32 0.0, %v1377
        %1379 = vmatprep.mubr.f32.mxu0 0.0
        %1380 = vmatmul.mubr.f32.gmra.mrb[0].mxu0 %v998
        %v1381 = vpop.f32.mrb[0].mxu0
        %v1382 = vadd.f32 0.0, %v1381
        %v1383 = vpop.f32.mrb[0].mxu0
        %v1384 = vadd.f32 0.0, %v1383
        %1385 = vmatprep.mubr.f32.mxu0 0.0
        %1386 = vmatmul.mubr.f32.gmra.mrb[0].mxu0 %v999
        %v1387 = vpop.f32.mrb[0].mxu0
        %v1388 = vadd.f32 0.0, %v1387
        %v1389 = vpop.f32.mrb[0].mxu0
        %v1390 = vadd.f32 0.0, %v1389
        %1391 = vmatprep.mubr.f32.mxu0 0.0
        %1392 = vmatmul.mubr.f32.gmra.mrb[0].mxu0 %v1000
        %v1393 = vpop.f32.mrb[0].mxu0
        %v1394 = vadd.f32 0.0, %v1393
        %v1395 = vpop.f32.mrb[0].mxu0
        %v1396 = vadd.f32 0.0, %v1395
        %1397 = vmatprep.mubr.f32.mxu0 0.0
        %1398 = vmatmul.mubr.f32.gmra.mrb[0].mxu0 %v1001
        %v1399 = vpop.f32.mrb[0].mxu0
        %v1400 = vadd.f32 0.0, %v1399
        %v1401 = vpop.f32.mrb[0].mxu0
        %v1402 = vadd.f32 0.0, %v1401
        %1403 = vdwg.mxu0
        %1404 = vmatprep.subr.mxu0 0.0
        %1405 = vmatpush1.msra.mxu0 %v1006
        %1406 = vmatprep.subr.mxu0 0.0
        %1407 = vmatpush1.msra.mxu0 %v1011
        %1408 = vmatprep.subr.mxu0 0.0
        %1409 = vmatpush1.msra.mxu0 %v1016
        %1410 = vmatprep.subr.mxu0 0.0
        %1411 = vmatpush1.msra.mxu0 %v1021
        %1412 = vmatprep.subr.mxu0 0.0
        %1413 = vmatpush1.msra.mxu0 %v1026
        %1414 = vmatprep.subr.mxu0 0.0
        %1415 = vmatpush1.msra.mxu0 %v1031
        %1416 = vmatprep.subr.mxu0 0.0
        %1417 = vmatpush1.msra.mxu0 %v1036
        %1418 = vmatprep.subr.mxu0 0.0
        %1419 = vmatpush1.msra.mxu0 %v1041
        %1420 = vmatprep.subr.mxu0 0.0
        %1421 = vmatpush1.msra.mxu0 %v1046
        %1422 = vmatprep.subr.mxu0 0.0
        %1423 = vmatpush1.msra.mxu0 %v1051
        %1424 = vmatprep.subr.mxu0 0.0
        %1425 = vmatpush1.msra.mxu0 %v1056
        %1426 = vmatprep.subr.mxu0 0.0
        %1427 = vmatpush1.msra.mxu0 %v1061
        %1428 = vmatprep.subr.mxu0 0.0
        %1429 = vmatpush1.msra.mxu0 %v1066
        %1430 = vmatprep.subr.mxu0 0.0
        %1431 = vmatpush1.msra.mxu0 %v1071
        %1432 = vmatprep.subr.mxu0 0.0
        %1433 = vmatpush1.msra.mxu0 %v1076
        %1434 = vmatprep.subr.mxu0 0.0
        %1435 = vmatpush1.msra.mxu0 %v1081
        %1436 = vmatprep.subr.mxu0 0.0
        %1437 = vmatpush1.msra.mxu0 0.0
        %1438 = vmatprep.subr.mxu0 0.0
        %1439 = vmatpush1.msra.mxu0 0.0
        %1440 = vmatprep.subr.mxu0 0.0
        %1441 = vmatpush1.msra.mxu0 0.0
        %1442 = vmatprep.subr.mxu0 0.0
        %1443 = vmatpush1.msra.mxu0 0.0
        %1444 = vmatprep.subr.mxu0 0.0
        %1445 = vmatpush1.msra.mxu0 0.0
        %1446 = vmatprep.subr.mxu0 0.0
        %1447 = vmatpush1.msra.mxu0 0.0
        %1448 = vmatprep.subr.mxu0 0.0
        %1449 = vmatpush1.msra.mxu0 0.0
        %1450 = vmatprep.subr.mxu0 0.0
        %1451 = vmatpush1.msra.mxu0 0.0
        %1452 = vmatprep.subr.mxu0 0.0
        %1453 = vmatpush1.msra.mxu0 0.0
        %1454 = vmatprep.subr.mxu0 0.0
        %1455 = vmatpush1.msra.mxu0 0.0
        %1456 = vmatprep.subr.mxu0 0.0
        %1457 = vmatpush1.msra.mxu0 0.0
        %1458 = vmatprep.subr.mxu0 0.0
        %1459 = vmatpush1.msra.mxu0 0.0
        %1460 = vmatprep.subr.mxu0 0.0
        %1461 = vmatpush1.msra.mxu0 0.0
        %1462 = vmatprep.subr.mxu0 0.0
        %1463 = vmatpush1.msra.mxu0 0.0
        %1464 = vmatprep.subr.mxu0 0.0
        %1465 = vmatpush1.msra.mxu0 0.0
        %1466 = vmatprep.subr.mxu0 0.0
        %1467 = vmatpush1.msra.mxu0 0.0
        %1468 = vmatprep.mubr.f32.mxu0 0.0
        %1469 = vmatmul.mubr.f32.gmra.mrb[0].mxu0 %v986
        %v1470 = vpop.f32.mrb[0].mxu0
        %v1471 = vadd.f32 0.0, %v1470
        %v1472 = vpop.f32.mrb[0].mxu0
        %1473 = vmatprep.mubr.f32.mxu0 0.0
        %1474 = vmatmul.mubr.f32.gmra.mrb[0].mxu0 %v987
        %v1475 = vpop.f32.mrb[0].mxu0
        %v1476 = vadd.f32 0.0, %v1475
        %v1477 = vpop.f32.mrb[0].mxu0
        %1478 = vmatprep.mubr.f32.mxu0 0.0
        %1479 = vmatmul.mubr.f32.gmra.mrb[0].mxu0 %v988
        %v1480 = vpop.f32.mrb[0].mxu0
        %v1481 = vadd.f32 0.0, %v1480
        %v1482 = vpop.f32.mrb[0].mxu0
        %1483 = vmatprep.mubr.f32.mxu0 0.0
        %1484 = vmatmul.mubr.f32.gmra.mrb[0].mxu0 %v989
        %v1485 = vpop.f32.mrb[0].mxu0
        %v1486 = vadd.f32 0.0, %v1485
        %v1487 = vpop.f32.mrb[0].mxu0
        %1488 = vmatprep.mubr.f32.mxu0 0.0
        %1489 = vmatmul.mubr.f32.gmra.mrb[0].mxu0 %v990
        %v1490 = vpop.f32.mrb[0].mxu0
        %v1491 = vadd.f32 0.0, %v1490
        %v1492 = vpop.f32.mrb[0].mxu0
        %1493 = vmatprep.mubr.f32.mxu0 0.0
        %1494 = vmatmul.mubr.f32.gmra.mrb[0].mxu0 %v991
        %v1495 = vpop.f32.mrb[0].mxu0
        %v1496 = vadd.f32 0.0, %v1495
        %v1497 = vpop.f32.mrb[0].mxu0
        %1498 = vmatprep.mubr.f32.mxu0 0.0
        %1499 = vmatmul.mubr.f32.gmra.mrb[0].mxu0 %v992
        %v1500 = vpop.f32.mrb[0].mxu0
        %v1501 = vadd.f32 0.0, %v1500
        %v1502 = vpop.f32.mrb[0].mxu0
        %1503 = vmatprep.mubr.f32.mxu0 0.0
        %1504 = vmatmul.mubr.f32.gmra.mrb[0].mxu0 %v993
        %v1505 = vpop.f32.mrb[0].mxu0
        %v1506 = vadd.f32 0.0, %v1505
        %v1507 = vpop.f32.mrb[0].mxu0
        %1508 = vmatprep.mubr.f32.mxu0 0.0
        %1509 = vmatmul.mubr.f32.gmra.mrb[0].mxu0 %v994
        %v1510 = vpop.f32.mrb[0].mxu0
        %v1511 = vadd.f32 0.0, %v1510
        %v1512 = vpop.f32.mrb[0].mxu0
        %1513 = vmatprep.mubr.f32.mxu0 0.0
        %1514 = vmatmul.mubr.f32.gmra.mrb[0].mxu0 %v995
        %v1515 = vpop.f32.mrb[0].mxu0
        %v1516 = vadd.f32 0.0, %v1515
        %v1517 = vpop.f32.mrb[0].mxu0
        %1518 = vmatprep.mubr.f32.mxu0 0.0
        %1519 = vmatmul.mubr.f32.gmra.mrb[0].mxu0 %v996
        %v1520 = vpop.f32.mrb[0].mxu0
        %v1521 = vadd.f32 0.0, %v1520
        %v1522 = vpop.f32.mrb[0].mxu0
        %1523 = vmatprep.mubr.f32.mxu0 0.0
        %1524 = vmatmul.mubr.f32.gmra.mrb[0].mxu0 %v997
        %v1525 = vpop.f32.mrb[0].mxu0
        %v1526 = vadd.f32 0.0, %v1525
        %v1527 = vpop.f32.mrb[0].mxu0
        %1528 = vmatprep.mubr.f32.mxu0 0.0
        %1529 = vmatmul.mubr.f32.gmra.mrb[0].mxu0 %v998
        %v1530 = vpop.f32.mrb[0].mxu0
        %v1531 = vadd.f32 0.0, %v1530
        %v1532 = vpop.f32.mrb[0].mxu0
        %1533 = vmatprep.mubr.f32.mxu0 0.0
        %1534 = vmatmul.mubr.f32.gmra.mrb[0].mxu0 %v999
        %v1535 = vpop.f32.mrb[0].mxu0
        %v1536 = vadd.f32 0.0, %v1535
        %v1537 = vpop.f32.mrb[0].mxu0
        %1538 = vmatprep.mubr.f32.mxu0 0.0
        %1539 = vmatmul.mubr.f32.gmra.mrb[0].mxu0 %v1000
        %v1540 = vpop.f32.mrb[0].mxu0
        %v1541 = vadd.f32 0.0, %v1540
        %v1542 = vpop.f32.mrb[0].mxu0
        %1543 = vmatprep.mubr.f32.mxu0 0.0
        %1544 = vmatmul.mubr.f32.gmra.mrb[0].mxu0 %v1001
        %v1545 = vpop.f32.mrb[0].mxu0
        %v1546 = vadd.f32 0.0, %v1545
        %v1547 = vpop.f32.mrb[0].mxu0
        %1548 = vdwg.mxu0
        %v1549 = vmax.f32 %v1149, 0.0
        %v1550 = vmax.f32 %v1151, 0.0
        %v1551 = vmax.f32 %v1310, 0.0
        %v1552 = vmax.f32 %v1312, 0.0
        %v1553 = vmax.f32 %v1471, 0.0
        %v1554 = vmax.f32 %v1155, 0.0
        %v1555 = vmax.f32 %v1157, 0.0
        %v1556 = vmax.f32 %v1316, 0.0
        %v1557 = vmax.f32 %v1318, 0.0
        %v1558 = vmax.f32 %v1476, 0.0
        %v1559 = vmax.f32 %v1161, 0.0
        %v1560 = vmax.f32 %v1163, 0.0
        %v1561 = vmax.f32 %v1322, 0.0
        %v1562 = vmax.f32 %v1324, 0.0
        %v1563 = vmax.f32 %v1481, 0.0
        %v1564 = vmax.f32 %v1167, 0.0
        %v1565 = vmax.f32 %v1169, 0.0
        %v1566 = vmax.f32 %v1328, 0.0
        %v1567 = vmax.f32 %v1330, 0.0
        %v1568 = vmax.f32 %v1486, 0.0
        %v1569 = vmax.f32 %v1173, 0.0
        %v1570 = vmax.f32 %v1175, 0.0
        %v1571 = vmax.f32 %v1334, 0.0
        %v1572 = vmax.f32 %v1336, 0.0
        %v1573 = vmax.f32 %v1491, 0.0
        %v1574 = vmax.f32 %v1179, 0.0
        %v1575 = vmax.f32 %v1181, 0.0
        %v1576 = vmax.f32 %v1340, 0.0
        %v1577 = vmax.f32 %v1342, 0.0
        %v1578 = vmax.f32 %v1496, 0.0
        %v1579 = vmax.f32 %v1185, 0.0
        %v1580 = vmax.f32 %v1187, 0.0
        %v1581 = vmax.f32 %v1346, 0.0
        %v1582 = vmax.f32 %v1348, 0.0
        %v1583 = vmax.f32 %v1501, 0.0
        %v1584 = vmax.f32 %v1191, 0.0
        %v1585 = vmax.f32 %v1193, 0.0
        %v1586 = vmax.f32 %v1352, 0.0
        %v1587 = vmax.f32 %v1354, 0.0
        %v1588 = vmax.f32 %v1506, 0.0
        %v1589 = vmax.f32 %v1197, 0.0
        %v1590 = vmax.f32 %v1199, 0.0
        %v1591 = vmax.f32 %v1358, 0.0
        %v1592 = vmax.f32 %v1360, 0.0
        %v1593 = vmax.f32 %v1511, 0.0
        %v1594 = vmax.f32 %v1203, 0.0
        %v1595 = vmax.f32 %v1205, 0.0
        %v1596 = vmax.f32 %v1364, 0.0
        %v1597 = vmax.f32 %v1366, 0.0
        %v1598 = vmax.f32 %v1516, 0.0
        %v1599 = vmax.f32 %v1209, 0.0
        %v1600 = vmax.f32 %v1211, 0.0
        %v1601 = vmax.f32 %v1370, 0.0
        %v1602 = vmax.f32 %v1372, 0.0
        %v1603 = vmax.f32 %v1521, 0.0
        %v1604 = vmax.f32 %v1215, 0.0
        %v1605 = vmax.f32 %v1217, 0.0
        %v1606 = vmax.f32 %v1376, 0.0
        %v1607 = vmax.f32 %v1378, 0.0
        %v1608 = vmax.f32 %v1526, 0.0
        %v1609 = vmax.f32 %v1221, 0.0
        %v1610 = vmax.f32 %v1223, 0.0
        %v1611 = vmax.f32 %v1382, 0.0
        %v1612 = vmax.f32 %v1384, 0.0
        %v1613 = vmax.f32 %v1531, 0.0
        %v1614 = vmax.f32 %v1227, 0.0
        %v1615 = vmax.f32 %v1229, 0.0
        %v1616 = vmax.f32 %v1388, 0.0
        %v1617 = vmax.f32 %v1390, 0.0
        %v1618 = vmax.f32 %v1536, 0.0
        %v1619 = vmax.f32 %v1233, 0.0
        %v1620 = vmax.f32 %v1235, 0.0
        %v1621 = vmax.f32 %v1394, 0.0
        %v1622 = vmax.f32 %v1396, 0.0
        %v1623 = vmax.f32 %v1541, 0.0
        %v1624 = vmax.f32 %v1239, 0.0
        %v1625 = vmax.f32 %v1241, 0.0
        %v1626 = vmax.f32 %v1400, 0.0
        %v1627 = vmax.f32 %v1402, 0.0
        %v1628 = vmax.f32 %v1546, 0.0
        %1629 = vst [vmem:[%s260] sm:$0xff] %v1549
        %1630 = vst [vmem:[%s260 + $0x8] sm:$0xff] %v1550
        %1631 = vst [vmem:[%s260 + $0x10] sm:$0xff] %v1551
        %1632 = vst [vmem:[%s260 + $0x18] sm:$0xff] %v1552
        %1633 = vst [vmem:[%s260 + $0x20] sm:$0xff] %v1553
        %1634 = vst [vmem:[%s260 + $0x28] sm:$0xff] %v1554
        %1635 = vst [vmem:[%s260 + $0x30] sm:$0xff] %v1555
        %1636 = vst [vmem:[%s260 + $0x38] sm:$0xff] %v1556
        %1637 = vst [vmem:[%s260 + $0x40] sm:$0xff] %v1557
        %1638 = vst [vmem:[%s260 + $0x48] sm:$0xff] %v1558
        %1639 = vst [vmem:[%s260 + $0x50] sm:$0xff] %v1559
        %1640 = vst [vmem:[%s260 + $0x58] sm:$0xff] %v1560
        %1641 = vst [vmem:[%s260 + $0x60] sm:$0xff] %v1561
        %1642 = vst [vmem:[%s260 + $0x68] sm:$0xff] %v1562
        %1643 = vst [vmem:[%s260 + $0x70] sm:$0xff] %v1563
        %1644 = vst [vmem:[%s260 + $0x78] sm:$0xff] %v1564
        %1645 = vst [vmem:[%s260 + $0x80] sm:$0xff] %v1565
        %1646 = vst [vmem:[%s260 + $0x88] sm:$0xff] %v1566
        %1647 = vst [vmem:[%s260 + $0x90] sm:$0xff] %v1567
        %1648 = vst [vmem:[%s260 + $0x98] sm:$0xff] %v1568
        %1649 = vst [vmem:[%s260 + $0xa0] sm:$0xff] %v1569
        %1650 = vst [vmem:[%s260 + $0xa8] sm:$0xff] %v1570
        %1651 = vst [vmem:[%s260 + $0xb0] sm:$0xff] %v1571
        %1652 = vst [vmem:[%s260 + $0xb8] sm:$0xff] %v1572
        %1653 = vst [vmem:[%s260 + $0xc0] sm:$0xff] %v1573
        %1654 = vst [vmem:[%s260 + $0xc8] sm:$0xff] %v1574
        %1655 = vst [vmem:[%s260 + $0xd0] sm:$0xff] %v1575
        %1656 = vst [vmem:[%s260 + $0xd8] sm:$0xff] %v1576
        %1657 = vst [vmem:[%s260 + $0xe0] sm:$0xff] %v1577
        %1658 = vst [vmem:[%s260 + $0xe8] sm:$0xff] %v1578
        %1659 = vst [vmem:[%s260 + $0xf0] sm:$0xff] %v1579
        %1660 = vst [vmem:[%s260 + $0xf8] sm:$0xff] %v1580
        %1661 = vst [vmem:[%s260 + $0x100] sm:$0xff] %v1581
        %1662 = vst [vmem:[%s260 + $0x108] sm:$0xff] %v1582
        %1663 = vst [vmem:[%s260 + $0x110] sm:$0xff] %v1583
        %1664 = vst [vmem:[%s260 + $0x118] sm:$0xff] %v1584
        %1665 = vst [vmem:[%s260 + $0x120] sm:$0xff] %v1585
        %1666 = vst [vmem:[%s260 + $0x128] sm:$0xff] %v1586
        %1667 = vst [vmem:[%s260 + $0x130] sm:$0xff] %v1587
        %1668 = vst [vmem:[%s260 + $0x138] sm:$0xff] %v1588
        %1669 = vst [vmem:[%s260 + $0x140] sm:$0xff] %v1589
        %1670 = vst [vmem:[%s260 + $0x148] sm:$0xff] %v1590
        %1671 = vst [vmem:[%s260 + $0x150] sm:$0xff] %v1591
        %1672 = vst [vmem:[%s260 + $0x158] sm:$0xff] %v1592
        %1673 = vst [vmem:[%s260 + $0x160] sm:$0xff] %v1593
        %1674 = vst [vmem:[%s260 + $0x168] sm:$0xff] %v1594
        %1675 = vst [vmem:[%s260 + $0x170] sm:$0xff] %v1595
        %1676 = vst [vmem:[%s260 + $0x178] sm:$0xff] %v1596
        %1677 = vst [vmem:[%s260 + $0x180] sm:$0xff] %v1597
        %1678 = vst [vmem:[%s260 + $0x188] sm:$0xff] %v1598
        %1679 = vst [vmem:[%s260 + $0x190] sm:$0xff] %v1599
        %1680 = vst [vmem:[%s260 + $0x198] sm:$0xff] %v1600
        %1681 = vst [vmem:[%s260 + $0x1a0] sm:$0xff] %v1601
        %1682 = vst [vmem:[%s260 + $0x1a8] sm:$0xff] %v1602
        %1683 = vst [vmem:[%s260 + $0x1b0] sm:$0xff] %v1603
        %1684 = vst [vmem:[%s260 + $0x1b8] sm:$0xff] %v1604
        %1685 = vst [vmem:[%s260 + $0x1c0] sm:$0xff] %v1605
        %1686 = vst [vmem:[%s260 + $0x1c8] sm:$0xff] %v1606
        %1687 = vst [vmem:[%s260 + $0x1d0] sm:$0xff] %v1607
        %1688 = vst [vmem:[%s260 + $0x1d8] sm:$0xff] %v1608
        %1689 = vst [vmem:[%s260 + $0x1e0] sm:$0xff] %v1609
        %1690 = vst [vmem:[%s260 + $0x1e8] sm:$0xff] %v1610
        %1691 = vst [vmem:[%s260 + $0x1f0] sm:$0xff] %v1611
        %1692 = vst [vmem:[%s260 + $0x1f8] sm:$0xff] %v1612
        %1693 = vst [vmem:[%s260 + $0x200] sm:$0xff] %v1613
        %1694 = vst [vmem:[%s260 + $0x208] sm:$0xff] %v1614
        %1695 = vst [vmem:[%s260 + $0x210] sm:$0xff] %v1615
        %1696 = vst [vmem:[%s260 + $0x218] sm:$0xff] %v1616
        %1697 = vst [vmem:[%s260 + $0x220] sm:$0xff] %v1617
        %1698 = vst [vmem:[%s260 + $0x228] sm:$0xff] %v1618
        %1699 = vst [vmem:[%s260 + $0x230] sm:$0xff] %v1619
        %1700 = vst [vmem:[%s260 + $0x238] sm:$0xff] %v1620
        %1701 = vst [vmem:[%s260 + $0x240] sm:$0xff] %v1621
        %1702 = vst [vmem:[%s260 + $0x248] sm:$0xff] %v1622
        %1703 = vst [vmem:[%s260 + $0x250] sm:$0xff] %v1623
        %1704 = vst [vmem:[%s260 + $0x258] sm:$0xff] %v1624
        %1705 = vst [vmem:[%s260 + $0x260] sm:$0xff] %v1625
        %1706 = vst [vmem:[%s260 + $0x268] sm:$0xff] %v1626
        %1707 = vst [vmem:[%s260 + $0x270] sm:$0xff] %v1627
        %1708 = vst [vmem:[%s260 + $0x278] sm:$0xff] %v1628
        %s1709 = sand.u32 %s120, 1
        %s1710 = scalar_lea.sflag [#allocation4], %s1709
        %s1711 = sand.u32 %s120, 1
        %s1712 = smul.addr %s1711, 640
        %s1713 = scalar_lea.vmem [#allocation10], %s1712
        // Predicated region
        $region53: #{tpu_custom_call.1} parent=35 // pred_check
          %p1714 = pneg %p130
        $region54: #{tpu_custom_call.1} parent=35 // pred_check_branch
          %1716 = sbr.rel (%p1714) target = $region56
        $region55: #{tpu_custom_call.1} parent=35 // pred_region
          %s1717 = smul.u32 16, %s23
          %s1719 = ssub.s32 10240, 10240
          %1720 = vsyncadd %s1710, %s1719
          %s1721 = smul.addr %s1717, 5
          %s1722 = smul.addr %s1721, 128
          %s1723 = scalar_lea.hbm %s4, %s1722
          %s1724 = sshll.u32 %s1713, 4
          %s1725 = int_to_ptr.vmem [resolvable:$true] %s1724
          %1730 = dma.vmem_to_hbm [thread:$0]  %s1725, 10240, %s1723, %s1710, 640, 640, 40
        $region56: #{tpu_custom_call.1} parent=35 // pred_fallthru
          _
      $region36: #{tpu_custom_call.1} parent=5 // pred_fallthru
        _
      %p1731 = scmp.le.s32.totalorder 2, %s18
      // Predicated region
      $region57: #{tpu_custom_call.1} parent=5 // pred_check
        %p1732 = pneg %p1731
      $region58: #{tpu_custom_call.1} parent=5 // pred_check_branch
        %1734 = sbr.rel (%p1732) target = $region60
      $region59: #{tpu_custom_call.1} parent=5 // pred_region
        %s1735 = ssub.s32 %s18, 2
        // Predicated region
        $region61: #{tpu_custom_call.1} parent=59 // pred_check
          %p1736 = pneg %p136
        $region62: #{tpu_custom_call.1} parent=59 // pred_check_branch
          %1738 = sbr.rel (%p1736) target = $region64
        $region63: #{tpu_custom_call.1} parent=59 // pred_region
          %s1739 = sand.u32 %s121, 1
          %s1740 = scalar_lea.sflag [#allocation4], %s1739
          %s1741 = sand.u32 %s121, 1
          %s1742 = smul.addr %s1741, 640
          %s1743 = scalar_lea.vmem [#allocation10], %s1742
          %1744 = dma.done %s1740, 10240
        $region64: #{tpu_custom_call.1} parent=59 // pred_fallthru
          _
      $region60: #{tpu_custom_call.1} parent=5 // pred_fallthru
        _
    $region6: #{tpu_custom_call.1} parent=1 // loop_footer
      %s22 = sadd.s32 1, %s18
    $region7: #{tpu_custom_call.1} parent=1 // loop_footer_branch
      %17 = sbr.rel target = $region3
    $region8: #{tpu_custom_call.1} parent=1 // loop_exit
      _
    %1745 = vsyncpa [#allocation3], 1
    %s1746 = scalar_lea.sflag [#allocation3], 1
    %1747 = vsyncpa %s1746, 1
    %1748 = vsyncpa [#allocation6], 1
    %1749 = vsyncpa [#allocation9], 1
    %1750 = vsyncpa [#allocation4], 1
    %s1751 = scalar_lea.sflag [#allocation4], 1
    %1752 = vsyncpa %s1751, 1

</llo_original>
